<compile_context>
chip_gen: v5e
topology: v5e:2x2
jax: 0.10.0
libtpu: 0.0.40
codegen_flags: <defaults>
</compile_context>

<pallas_src>
import functools

import jax
import jax.numpy as jnp
from jax import lax
from jax.experimental import pallas as pl
from jax.experimental.pallas import tpu as pltpu


def decoder_kernel(enc_ref, w1hc_ref, w1e_ref, b1_ref, w2_ref,
                   wg_ref, btab_ref, wfin_ref,
                   b2_ref, bfin_ref,
                   out_ref, *, T, E, D):
    B = enc_ref.shape[0]
    Tm1 = T - 1

    # ---- loop-invariant loads / precompute (hoisted out of the decode loop) ----
    enc = enc_ref[...]                                        # (B, T, E)
    enc_proj = jnp.dot(enc.reshape(B * T, E), w1e_ref[...],
                       preferred_element_type=jnp.float32).reshape(B, T, E)

    w1hc = w1hc_ref[...]                                      # (2D, E)   [W1_h; W1_c]
    b1 = b1_ref[...]                                          # (1, E)
    w2 = w2_ref[0, :]                                         # (E,)
    wg = wg_ref[...]                                          # (E+D, 4D) [W_fc_ctx⊗W_ih; W_hh]
    btab = btab_ref[...]                                      # (T-1, B, 4D) fused y/bias table
    wfin = wfin_ref[...]                                      # (1, D+E)  [W_fin_h | W_fin_ctx]
    b2 = b2_ref[0]                                            # SMEM scalar
    bfin = bfin_ref[0]                                        # SMEM scalar

    h = jnp.zeros((B, D), jnp.float32)
    c = jnp.zeros((B, D), jnp.float32)
    ctx = jnp.zeros((B, E), jnp.float32)

    # ---- fully unrolled sequential decode (Tm1 is small and static) ----
    for t in range(Tm1):
        # attention over the T encoder steps (one fused matmul for h- and c-proj)
        hc = jnp.dot(jnp.concatenate([h, c], axis=-1), w1hc,
                     preferred_element_type=jnp.float32) + b1  # (B, E)
        z = jnp.tanh(enc_proj + hc[:, None, :])                # (B, T, E)
        logits = jnp.sum(z * w2[None, None, :], axis=-1) + b2  # (B, T)
        m = jnp.max(logits, axis=-1, keepdims=True)
        e = jnp.exp(logits - m)
        attn = e / jnp.sum(e, axis=-1, keepdims=True)          # softmax over T
        ctx = jnp.sum(attn[:, :, None] * enc, axis=1)          # (B, E) context

        # fused fc + LSTM step: one matmul + precomputed per-step bias table.
        # gates = ctx @ (W_fc_ctx ⊗ W_ih) + h @ W_hh + [(y_t*w_fc_y + b_fc)*W_ih + b_lstm]
        gates = (jnp.dot(jnp.concatenate([ctx, h], axis=-1), wg,
                         preferred_element_type=jnp.float32)
                 + btab[t])                                    # (B, 4D)
        i_g = jax.nn.sigmoid(gates[:, 0:D])
        f_g = jax.nn.sigmoid(gates[:, D:2 * D])
        g_g = jnp.tanh(gates[:, 2 * D:3 * D])
        o_g = jax.nn.sigmoid(gates[:, 3 * D:4 * D])
        c = f_g * c + i_g * g_g
        h = o_g * jnp.tanh(c)

    # ---- fc_final([hidden, context]) ----
    out = (jnp.sum(h * wfin[:, :D], axis=-1)
           + jnp.sum(ctx * wfin[:, D:], axis=-1) + bfin)       # (B,)
    out_ref[...] = out[:, None]


def decoder_forward(params, input_encoded, y_history):
    B, T, E = input_encoded.shape
    D = params["whh"].shape[0]
    assert y_history.shape == (B, T - 1)
    f32 = jnp.float32

    # ---- host-side algebraic fusions (pure re-parameterizations) ----
    # attention: concat the h- and c- projections -> single (2D, E) weight.
    w1hc = jnp.concatenate([params["w1h"], params["w1c"]], axis=0).astype(f32)

    wfc = params["wfc"].astype(f32)                            # (1, E+1)
    wih = params["wih"].astype(f32)                            # (1, 4D)
    blstm = params["blstm"].astype(f32)                        # (1, 4D)
    # fc(context)-into-gates: outer product folded into the gate weight
    # (built with an elementwise broadcast multiply -> exact f32).
    w_ctx_gates = wfc[0, :E][:, None] * wih[0, :][None, :]     # (E, 4D)
    wg = jnp.concatenate([w_ctx_gates, params["whh"].astype(f32)],
                         axis=0)                               # (E+D, 4D)
    # per-step y-history + biases folded into a tiny bias table.
    ybias = y_history.astype(f32).T * wfc[0, E] + params["bfc"][0, 0]   # (T-1, B)
    btab = (ybias[:, :, None] * wih[0][None, None, :]
            + blstm[0][None, None, :])                         # (T-1, B, 4D)

    kernel = functools.partial(decoder_kernel, T=T, E=E, D=D)
    vmem = pl.BlockSpec(memory_space=pltpu.MemorySpace.VMEM)
    smem = pl.BlockSpec(memory_space=pltpu.MemorySpace.SMEM)

    inputs = (
        input_encoded.astype(f32),
        w1hc,
        params["w1e"].astype(f32),
        params["b1"].astype(f32),
        params["w2"].astype(f32),
        wg,
        btab,
        params["wfin"].astype(f32),
        params["b2"].reshape(1).astype(f32),                   # SMEM scalar
        params["bfin"].reshape(1).astype(f32),                 # SMEM scalar
    )
    in_specs = [vmem] * 8 + [smem] * 2
    return pl.pallas_call(
        kernel,
        out_shape=jax.ShapeDtypeStruct((B, 1), f32),
        in_specs=in_specs,
        out_specs=vmem,
    )(*inputs)


def decoder_reference(params, enc, y_hist):
    """Pure-JAX mirror of the PyTorch forward pass (unfused, HIGHEST precision)."""
    B, T, E = enc.shape
    D = params["whh"].shape[0]
    hp = lax.Precision.HIGHEST
    h = jnp.zeros((B, D), jnp.float32)
    c = jnp.zeros((B, D), jnp.float32)
    ctx = jnp.zeros((B, E), jnp.float32)
    enc_proj = jnp.einsum("bte,ef->btf", enc, params["w1e"], precision=hp)
    for t in range(T - 1):
        hc = (jnp.dot(h, params["w1h"], precision=hp)
              + jnp.dot(c, params["w1c"], precision=hp) + params["b1"])
        z = jnp.tanh(enc_proj + hc[:, None, :])
        logits = jnp.sum(z * params["w2"][0][None, None, :], -1) + params["b2"][0, 0]
        attn = jax.nn.softmax(logits, axis=-1)
        ctx = jnp.einsum("bt,bte->be", attn, enc, precision=hp)
        y_tild = (jnp.sum(ctx * params["wfc"][:, :E], -1)
                  + y_hist[:, t] * params["wfc"][0, E] + params["bfc"][0, 0])
        gates = (y_tild[:, None] * params["wih"]
                 + jnp.dot(h, params["whh"], precision=hp) + params["blstm"])
        i = jax.nn.sigmoid(gates[:, :D])
        f = jax.nn.sigmoid(gates[:, D:2 * D])
        g = jnp.tanh(gates[:, 2 * D:3 * D])
        o = jax.nn.sigmoid(gates[:, 3 * D:])
        c = f * c + i * g
        h = o * jnp.tanh(c)
    out = (jnp.sum(h * params["wfin"][:, :D], -1)
           + jnp.sum(ctx * params["wfin"][:, D:], -1) + params["bfin"][0, 0])
    return out[:, None]


def make_params(key, E, D):
    ks = jax.random.split(key, 12)

    def rn(k, shape, scale=0.1):
        return scale * jax.random.normal(k, shape, jnp.float32)

    return {
        # attn_layer[0]: Linear(2D+E -> E), stored transposed and split.
        "w1h": rn(ks[0], (D, E)),
        "w1c": rn(ks[1], (D, E)),
        "w1e": rn(ks[2], (E, E)),
        "b1": rn(ks[3], (1, E)),
        # attn_layer[2]: Linear(E -> 1).
        "w2": rn(ks[4], (1, E)),
        "b2": rn(ks[5], (1, 1)),
        # fc: Linear(E+1 -> 1); weight drawn standard-normal-ish like .normal_().
        "wfc": rn(ks[6], (1, E + 1), scale=1.0),
        "bfc": rn(ks[7], (1, 1)),
        # lstm (input_size=1, hidden_size=D): weight_ih (4D,1) -> (1,4D),
        # weight_hh (4D,D) -> (D,4D), biases combined (b_ih + b_hh) -> (1,4D).
        "wih": rn(ks[8], (1, 4 * D)),
        "whh": rn(ks[9], (D, 4 * D)),
        "blstm": rn(ks[10], (1, 4 * D)),
        # fc_final: Linear(E+D -> 1), stored as (1, D+E) = [W_h | W_ctx].
        "wfin": rn(ks[11], (1, D + E)),
        "bfin": jnp.zeros((1, 1), jnp.float32),
    }


if __name__ == "__main__":
    B, T, E, D = 2, 8, 32, 32

    key = jax.random.PRNGKey(0)
    k_params, k_enc, k_y = jax.random.split(key, 3)
    params = make_params(k_params, E, D)
    input_encoded = jax.random.normal(k_enc, (B, T, E), jnp.float32)
    y_history = jax.random.normal(k_y, (B, T - 1), jnp.float32)

    out = decoder_forward(params, input_encoded, y_history)
    out = jax.block_until_ready(out)
    assert out.shape == (B, 1)

    ref = decoder_reference(params, input_encoded, y_history)
    # Tolerance covers the MXU default-precision matmuls vs the HIGHEST-precision
    # reference plus the exact-in-real-arithmetic operator fusions.
    assert jnp.allclose(out, ref, rtol=2e-3, atol=5e-3), (out, ref)

    print("KERNEL_OK")
</pallas_src>

<mosaic_0001>
module attributes {stable_mosaic.version = 11 : i64} {
  func.func @decoder_kernel(%arg0: memref<2x8x32xf32, #tpu.memory_space<vmem>>, %arg1: memref<64x32xf32, #tpu.memory_space<vmem>>, %arg2: memref<32x32xf32, #tpu.memory_space<vmem>>, %arg3: memref<1x32xf32, #tpu.memory_space<vmem>>, %arg4: memref<1x32xf32, #tpu.memory_space<vmem>>, %arg5: memref<64x128xf32, #tpu.memory_space<vmem>>, %arg6: memref<7x2x128xf32, #tpu.memory_space<vmem>>, %arg7: memref<1x64xf32, #tpu.memory_space<vmem>>, %arg8: memref<1xf32, #tpu.memory_space<smem>>, %arg9: memref<1xf32, #tpu.memory_space<smem>>, %arg10: memref<2x1xf32, #tpu.memory_space<vmem>>) attributes {dimension_semantics = [], scalar_prefetch = 0 : i64, scratch_operands = 0 : i64, tpu.core_type = #tpu.core_type<tc>} {
    %c0 = arith.constant 0 : index
    %c0_0 = arith.constant 0 : index
    %c0_1 = arith.constant 0 : index
    %0 = vector.load %arg0[%c0, %c0_0, %c0_1] : memref<2x8x32xf32, #tpu.memory_space<vmem>>, vector<2x8x32xf32>
    %1 = vector.shape_cast %0 : vector<2x8x32xf32> to vector<16x32xf32>
    %c0_2 = arith.constant 0 : index
    %c0_3 = arith.constant 0 : index
    %2 = vector.load %arg2[%c0_2, %c0_3] : memref<32x32xf32, #tpu.memory_space<vmem>>, vector<32x32xf32>
    %cst = arith.constant dense<0.000000e+00> : vector<16x32xf32>
    %3 = tpu.matmul %1, %2, %cst {dimension_numbers = #tpu.dot_dimension_numbers<[1], [0], [0], [1], [0, 0, 1, 1], [], []>} : vector<16x32xf32>, vector<32x32xf32>, vector<16x32xf32> -> vector<16x32xf32>
    %4 = vector.shape_cast %3 : vector<16x32xf32> to vector<2x8x32xf32>
    %c0_4 = arith.constant 0 : index
    %c0_5 = arith.constant 0 : index
    %5 = vector.load %arg1[%c0_4, %c0_5] : memref<64x32xf32, #tpu.memory_space<vmem>>, vector<64x32xf32>
    %c0_6 = arith.constant 0 : index
    %c0_7 = arith.constant 0 : index
    %6 = vector.load %arg3[%c0_6, %c0_7] : memref<1x32xf32, #tpu.memory_space<vmem>>, vector<1x32xf32>
    %c0_8 = arith.constant 0 : index
    %c0_9 = arith.constant 0 : index
    %7 = vector.load %arg4[%c0_8, %c0_9] : memref<1x32xf32, #tpu.memory_space<vmem>>, vector<1x32xf32>
    %8 = vector.shape_cast %7 : vector<1x32xf32> to vector<32xf32>
    %c0_10 = arith.constant 0 : index
    %c0_11 = arith.constant 0 : index
    %9 = vector.load %arg5[%c0_10, %c0_11] : memref<64x128xf32, #tpu.memory_space<vmem>>, vector<64x128xf32>
    %c0_12 = arith.constant 0 : index
    %c0_13 = arith.constant 0 : index
    %c0_14 = arith.constant 0 : index
    %10 = vector.load %arg6[%c0_12, %c0_13, %c0_14] : memref<7x2x128xf32, #tpu.memory_space<vmem>>, vector<7x2x128xf32>
    %c0_15 = arith.constant 0 : index
    %c0_16 = arith.constant 0 : index
    %11 = vector.load %arg7[%c0_15, %c0_16] : memref<1x64xf32, #tpu.memory_space<vmem>>, vector<1x64xf32>
    %c0_17 = arith.constant 0 : index
    %12 = memref.load %arg8[%c0_17] : memref<1xf32, #tpu.memory_space<smem>>
    %c0_18 = arith.constant 0 : index
    %13 = memref.load %arg9[%c0_18] : memref<1xf32, #tpu.memory_space<smem>>
    %cst_19 = arith.constant 0.000000e+00 : f32
    %14 = vector.broadcast %cst_19 : f32 to vector<2x32xf32>
    %cst_20 = arith.constant 0.000000e+00 : f32
    %15 = vector.broadcast %cst_20 : f32 to vector<2x32xf32>
    %16 = tpu.concatenate %14, %15 in 1 : vector<2x32xf32>, vector<2x32xf32> -> vector<2x64xf32>
    %cst_21 = arith.constant dense<0.000000e+00> : vector<2x32xf32>
    %17 = tpu.matmul %16, %5, %cst_21 {dimension_numbers = #tpu.dot_dimension_numbers<[1], [0], [0], [1], [0, 0, 1, 1], [], []>} : vector<2x64xf32>, vector<64x32xf32>, vector<2x32xf32> -> vector<2x32xf32>
    %18 = vector.broadcast %6 : vector<1x32xf32> to vector<2x32xf32>
    %19 = arith.addf %17, %18 : vector<2x32xf32>
    %20 = vector.shape_cast %19 : vector<2x32xf32> to vector<2x1x32xf32>
    %21 = vector.broadcast %20 : vector<2x1x32xf32> to vector<2x8x32xf32>
    %22 = arith.addf %4, %21 : vector<2x8x32xf32>
    %23 = math.tanh %22 : vector<2x8x32xf32>
    %24 = vector.shape_cast %8 : vector<32xf32> to vector<1x1x32xf32>
    %25 = vector.broadcast %24 : vector<1x1x32xf32> to vector<2x8x32xf32>
    %26 = arith.mulf %23, %25 : vector<2x8x32xf32>
    %cst_22 = arith.constant dense<0.000000e+00> : vector<2x8xf32>
    %27 = vector.multi_reduction <add>, %26, %cst_22 [2] : vector<2x8x32xf32> to vector<2x8xf32>
    %28 = vector.broadcast %12 : f32 to vector<2x8xf32>
    %29 = arith.addf %27, %28 : vector<2x8xf32>
    %cst_23 = arith.constant dense<0xFF800000> : vector<2xf32>
    %30 = vector.multi_reduction <maximumf>, %29, %cst_23 [1] : vector<2x8xf32> to vector<2xf32>
    %31 = vector.shape_cast %30 : vector<2xf32> to vector<2x1xf32>
    %32 = vector.broadcast %31 : vector<2x1xf32> to vector<2x8xf32>
    %33 = arith.subf %29, %32 : vector<2x8xf32>
    %34 = math.exp %33 : vector<2x8xf32>
    %cst_24 = arith.constant dense<0.000000e+00> : vector<2xf32>
    %35 = vector.multi_reduction <add>, %34, %cst_24 [1] : vector<2x8xf32> to vector<2xf32>
    %36 = vector.shape_cast %35 : vector<2xf32> to vector<2x1xf32>
    %37 = vector.broadcast %36 : vector<2x1xf32> to vector<2x8xf32>
    %38 = arith.divf %34, %37 : vector<2x8xf32>
    %39 = vector.shape_cast %38 : vector<2x8xf32> to vector<2x8x1xf32>
    %40 = vector.broadcast %39 : vector<2x8x1xf32> to vector<2x8x32xf32>
    %41 = arith.mulf %40, %0 : vector<2x8x32xf32>
    %cst_25 = arith.constant dense<0.000000e+00> : vector<2x32xf32>
    %42 = vector.multi_reduction <add>, %41, %cst_25 [1] : vector<2x8x32xf32> to vector<2x32xf32>
    %43 = tpu.concatenate %42, %14 in 1 : vector<2x32xf32>, vector<2x32xf32> -> vector<2x64xf32>
    %cst_26 = arith.constant dense<0.000000e+00> : vector<2x128xf32>
    %44 = tpu.matmul %43, %9, %cst_26 {dimension_numbers = #tpu.dot_dimension_numbers<[1], [0], [0], [1], [0, 0, 1, 1], [], []>} : vector<2x64xf32>, vector<64x128xf32>, vector<2x128xf32> -> vector<2x128xf32>
    %45 = vector.extract_strided_slice %10 {offsets = [0, 0, 0], sizes = [1, 2, 128], strides = [1, 1, 1]} : vector<7x2x128xf32> to vector<1x2x128xf32>
    %46 = vector.shape_cast %45 : vector<1x2x128xf32> to vector<2x128xf32>
    %47 = arith.addf %44, %46 : vector<2x128xf32>
    %48 = vector.extract_strided_slice %47 {offsets = [0, 0], sizes = [2, 32], strides = [1, 1]} : vector<2x128xf32> to vector<2x32xf32>
    %49 = arith.negf %48 : vector<2x32xf32>
    %50 = math.exp %49 : vector<2x32xf32>
    %cst_27 = arith.constant 1.000000e+00 : f32
    %51 = vector.broadcast %cst_27 : f32 to vector<2x32xf32>
    %52 = arith.addf %51, %50 : vector<2x32xf32>
    %53 = arith.divf %51, %52 : vector<2x32xf32>
    %54 = vector.extract_strided_slice %47 {offsets = [0, 32], sizes = [2, 32], strides = [1, 1]} : vector<2x128xf32> to vector<2x32xf32>
    %55 = arith.negf %54 : vector<2x32xf32>
    %56 = math.exp %55 : vector<2x32xf32>
    %cst_28 = arith.constant 1.000000e+00 : f32
    %57 = vector.broadcast %cst_28 : f32 to vector<2x32xf32>
    %58 = arith.addf %57, %56 : vector<2x32xf32>
    %59 = arith.divf %57, %58 : vector<2x32xf32>
    %60 = vector.extract_strided_slice %47 {offsets = [0, 64], sizes = [2, 32], strides = [1, 1]} : vector<2x128xf32> to vector<2x32xf32>
    %61 = math.tanh %60 : vector<2x32xf32>
    %62 = vector.extract_strided_slice %47 {offsets = [0, 96], sizes = [2, 32], strides = [1, 1]} : vector<2x128xf32> to vector<2x32xf32>
    %63 = arith.negf %62 : vector<2x32xf32>
    %64 = math.exp %63 : vector<2x32xf32>
    %cst_29 = arith.constant 1.000000e+00 : f32
    %65 = vector.broadcast %cst_29 : f32 to vector<2x32xf32>
    %66 = arith.addf %65, %64 : vector<2x32xf32>
    %67 = arith.divf %65, %66 : vector<2x32xf32>
    %68 = arith.mulf %59, %15 : vector<2x32xf32>
    %69 = arith.mulf %53, %61 : vector<2x32xf32>
    %70 = arith.addf %68, %69 : vector<2x32xf32>
    %71 = math.tanh %70 : vector<2x32xf32>
    %72 = arith.mulf %67, %71 : vector<2x32xf32>
    %73 = tpu.concatenate %72, %70 in 1 : vector<2x32xf32>, vector<2x32xf32> -> vector<2x64xf32>
    %cst_30 = arith.constant dense<0.000000e+00> : vector<2x32xf32>
    %74 = tpu.matmul %73, %5, %cst_30 {dimension_numbers = #tpu.dot_dimension_numbers<[1], [0], [0], [1], [0, 0, 1, 1], [], []>} : vector<2x64xf32>, vector<64x32xf32>, vector<2x32xf32> -> vector<2x32xf32>
    %75 = vector.broadcast %6 : vector<1x32xf32> to vector<2x32xf32>
    %76 = arith.addf %74, %75 : vector<2x32xf32>
    %77 = vector.shape_cast %76 : vector<2x32xf32> to vector<2x1x32xf32>
    %78 = vector.broadcast %77 : vector<2x1x32xf32> to vector<2x8x32xf32>
    %79 = arith.addf %4, %78 : vector<2x8x32xf32>
    %80 = math.tanh %79 : vector<2x8x32xf32>
    %81 = vector.shape_cast %8 : vector<32xf32> to vector<1x1x32xf32>
    %82 = vector.broadcast %81 : vector<1x1x32xf32> to vector<2x8x32xf32>
    %83 = arith.mulf %80, %82 : vector<2x8x32xf32>
    %cst_31 = arith.constant dense<0.000000e+00> : vector<2x8xf32>
    %84 = vector.multi_reduction <add>, %83, %cst_31 [2] : vector<2x8x32xf32> to vector<2x8xf32>
    %85 = vector.broadcast %12 : f32 to vector<2x8xf32>
    %86 = arith.addf %84, %85 : vector<2x8xf32>
    %cst_32 = arith.constant dense<0xFF800000> : vector<2xf32>
    %87 = vector.multi_reduction <maximumf>, %86, %cst_32 [1] : vector<2x8xf32> to vector<2xf32>
    %88 = vector.shape_cast %87 : vector<2xf32> to vector<2x1xf32>
    %89 = vector.broadcast %88 : vector<2x1xf32> to vector<2x8xf32>
    %90 = arith.subf %86, %89 : vector<2x8xf32>
    %91 = math.exp %90 : vector<2x8xf32>
    %cst_33 = arith.constant dense<0.000000e+00> : vector<2xf32>
    %92 = vector.multi_reduction <add>, %91, %cst_33 [1] : vector<2x8xf32> to vector<2xf32>
    %93 = vector.shape_cast %92 : vector<2xf32> to vector<2x1xf32>
    %94 = vector.broadcast %93 : vector<2x1xf32> to vector<2x8xf32>
    %95 = arith.divf %91, %94 : vector<2x8xf32>
    %96 = vector.shape_cast %95 : vector<2x8xf32> to vector<2x8x1xf32>
    %97 = vector.broadcast %96 : vector<2x8x1xf32> to vector<2x8x32xf32>
    %98 = arith.mulf %97, %0 : vector<2x8x32xf32>
    %cst_34 = arith.constant dense<0.000000e+00> : vector<2x32xf32>
    %99 = vector.multi_reduction <add>, %98, %cst_34 [1] : vector<2x8x32xf32> to vector<2x32xf32>
    %100 = tpu.concatenate %99, %72 in 1 : vector<2x32xf32>, vector<2x32xf32> -> vector<2x64xf32>
    %cst_35 = arith.constant dense<0.000000e+00> : vector<2x128xf32>
    %101 = tpu.matmul %100, %9, %cst_35 {dimension_numbers = #tpu.dot_dimension_numbers<[1], [0], [0], [1], [0, 0, 1, 1], [], []>} : vector<2x64xf32>, vector<64x128xf32>, vector<2x128xf32> -> vector<2x128xf32>
    %102 = vector.extract_strided_slice %10 {offsets = [1, 0, 0], sizes = [1, 2, 128], strides = [1, 1, 1]} : vector<7x2x128xf32> to vector<1x2x128xf32>
    %103 = vector.shape_cast %102 : vector<1x2x128xf32> to vector<2x128xf32>
    %104 = arith.addf %101, %103 : vector<2x128xf32>
    %105 = vector.extract_strided_slice %104 {offsets = [0, 0], sizes = [2, 32], strides = [1, 1]} : vector<2x128xf32> to vector<2x32xf32>
    %106 = arith.negf %105 : vector<2x32xf32>
    %107 = math.exp %106 : vector<2x32xf32>
    %cst_36 = arith.constant 1.000000e+00 : f32
    %108 = vector.broadcast %cst_36 : f32 to vector<2x32xf32>
    %109 = arith.addf %108, %107 : vector<2x32xf32>
    %110 = arith.divf %108, %109 : vector<2x32xf32>
    %111 = vector.extract_strided_slice %104 {offsets = [0, 32], sizes = [2, 32], strides = [1, 1]} : vector<2x128xf32> to vector<2x32xf32>
    %112 = arith.negf %111 : vector<2x32xf32>
    %113 = math.exp %112 : vector<2x32xf32>
    %cst_37 = arith.constant 1.000000e+00 : f32
    %114 = vector.broadcast %cst_37 : f32 to vector<2x32xf32>
    %115 = arith.addf %114, %113 : vector<2x32xf32>
    %116 = arith.divf %114, %115 : vector<2x32xf32>
    %117 = vector.extract_strided_slice %104 {offsets = [0, 64], sizes = [2, 32], strides = [1, 1]} : vector<2x128xf32> to vector<2x32xf32>
    %118 = math.tanh %117 : vector<2x32xf32>
    %119 = vector.extract_strided_slice %104 {offsets = [0, 96], sizes = [2, 32], strides = [1, 1]} : vector<2x128xf32> to vector<2x32xf32>
    %120 = arith.negf %119 : vector<2x32xf32>
    %121 = math.exp %120 : vector<2x32xf32>
    %cst_38 = arith.constant 1.000000e+00 : f32
    %122 = vector.broadcast %cst_38 : f32 to vector<2x32xf32>
    %123 = arith.addf %122, %121 : vector<2x32xf32>
    %124 = arith.divf %122, %123 : vector<2x32xf32>
    %125 = arith.mulf %116, %70 : vector<2x32xf32>
    %126 = arith.mulf %110, %118 : vector<2x32xf32>
    %127 = arith.addf %125, %126 : vector<2x32xf32>
    %128 = math.tanh %127 : vector<2x32xf32>
    %129 = arith.mulf %124, %128 : vector<2x32xf32>
    %130 = tpu.concatenate %129, %127 in 1 : vector<2x32xf32>, vector<2x32xf32> -> vector<2x64xf32>
    %cst_39 = arith.constant dense<0.000000e+00> : vector<2x32xf32>
    %131 = tpu.matmul %130, %5, %cst_39 {dimension_numbers = #tpu.dot_dimension_numbers<[1], [0], [0], [1], [0, 0, 1, 1], [], []>} : vector<2x64xf32>, vector<64x32xf32>, vector<2x32xf32> -> vector<2x32xf32>
    %132 = vector.broadcast %6 : vector<1x32xf32> to vector<2x32xf32>
    %133 = arith.addf %131, %132 : vector<2x32xf32>
    %134 = vector.shape_cast %133 : vector<2x32xf32> to vector<2x1x32xf32>
    %135 = vector.broadcast %134 : vector<2x1x32xf32> to vector<2x8x32xf32>
    %136 = arith.addf %4, %135 : vector<2x8x32xf32>
    %137 = math.tanh %136 : vector<2x8x32xf32>
    %138 = vector.shape_cast %8 : vector<32xf32> to vector<1x1x32xf32>
    %139 = vector.broadcast %138 : vector<1x1x32xf32> to vector<2x8x32xf32>
    %140 = arith.mulf %137, %139 : vector<2x8x32xf32>
    %cst_40 = arith.constant dense<0.000000e+00> : vector<2x8xf32>
    %141 = vector.multi_reduction <add>, %140, %cst_40 [2] : vector<2x8x32xf32> to vector<2x8xf32>
    %142 = vector.broadcast %12 : f32 to vector<2x8xf32>
    %143 = arith.addf %141, %142 : vector<2x8xf32>
    %cst_41 = arith.constant dense<0xFF800000> : vector<2xf32>
    %144 = vector.multi_reduction <maximumf>, %143, %cst_41 [1] : vector<2x8xf32> to vector<2xf32>
    %145 = vector.shape_cast %144 : vector<2xf32> to vector<2x1xf32>
    %146 = vector.broadcast %145 : vector<2x1xf32> to vector<2x8xf32>
    %147 = arith.subf %143, %146 : vector<2x8xf32>
    %148 = math.exp %147 : vector<2x8xf32>
    %cst_42 = arith.constant dense<0.000000e+00> : vector<2xf32>
    %149 = vector.multi_reduction <add>, %148, %cst_42 [1] : vector<2x8xf32> to vector<2xf32>
    %150 = vector.shape_cast %149 : vector<2xf32> to vector<2x1xf32>
    %151 = vector.broadcast %150 : vector<2x1xf32> to vector<2x8xf32>
    %152 = arith.divf %148, %151 : vector<2x8xf32>
    %153 = vector.shape_cast %152 : vector<2x8xf32> to vector<2x8x1xf32>
    %154 = vector.broadcast %153 : vector<2x8x1xf32> to vector<2x8x32xf32>
    %155 = arith.mulf %154, %0 : vector<2x8x32xf32>
    %cst_43 = arith.constant dense<0.000000e+00> : vector<2x32xf32>
    %156 = vector.multi_reduction <add>, %155, %cst_43 [1] : vector<2x8x32xf32> to vector<2x32xf32>
    %157 = tpu.concatenate %156, %129 in 1 : vector<2x32xf32>, vector<2x32xf32> -> vector<2x64xf32>
    %cst_44 = arith.constant dense<0.000000e+00> : vector<2x128xf32>
    %158 = tpu.matmul %157, %9, %cst_44 {dimension_numbers = #tpu.dot_dimension_numbers<[1], [0], [0], [1], [0, 0, 1, 1], [], []>} : vector<2x64xf32>, vector<64x128xf32>, vector<2x128xf32> -> vector<2x128xf32>
    %159 = vector.extract_strided_slice %10 {offsets = [2, 0, 0], sizes = [1, 2, 128], strides = [1, 1, 1]} : vector<7x2x128xf32> to vector<1x2x128xf32>
    %160 = vector.shape_cast %159 : vector<1x2x128xf32> to vector<2x128xf32>
    %161 = arith.addf %158, %160 : vector<2x128xf32>
    %162 = vector.extract_strided_slice %161 {offsets = [0, 0], sizes = [2, 32], strides = [1, 1]} : vector<2x128xf32> to vector<2x32xf32>
    %163 = arith.negf %162 : vector<2x32xf32>
    %164 = math.exp %163 : vector<2x32xf32>
    %cst_45 = arith.constant 1.000000e+00 : f32
    %165 = vector.broadcast %cst_45 : f32 to vector<2x32xf32>
    %166 = arith.addf %165, %164 : vector<2x32xf32>
    %167 = arith.divf %165, %166 : vector<2x32xf32>
    %168 = vector.extract_strided_slice %161 {offsets = [0, 32], sizes = [2, 32], strides = [1, 1]} : vector<2x128xf32> to vector<2x32xf32>
    %169 = arith.negf %168 : vector<2x32xf32>
    %170 = math.exp %169 : vector<2x32xf32>
    %cst_46 = arith.constant 1.000000e+00 : f32
    %171 = vector.broadcast %cst_46 : f32 to vector<2x32xf32>
    %172 = arith.addf %171, %170 : vector<2x32xf32>
    %173 = arith.divf %171, %172 : vector<2x32xf32>
    %174 = vector.extract_strided_slice %161 {offsets = [0, 64], sizes = [2, 32], strides = [1, 1]} : vector<2x128xf32> to vector<2x32xf32>
    %175 = math.tanh %174 : vector<2x32xf32>
    %176 = vector.extract_strided_slice %161 {offsets = [0, 96], sizes = [2, 32], strides = [1, 1]} : vector<2x128xf32> to vector<2x32xf32>
    %177 = arith.negf %176 : vector<2x32xf32>
    %178 = math.exp %177 : vector<2x32xf32>
    %cst_47 = arith.constant 1.000000e+00 : f32
    %179 = vector.broadcast %cst_47 : f32 to vector<2x32xf32>
    %180 = arith.addf %179, %178 : vector<2x32xf32>
    %181 = arith.divf %179, %180 : vector<2x32xf32>
    %182 = arith.mulf %173, %127 : vector<2x32xf32>
    %183 = arith.mulf %167, %175 : vector<2x32xf32>
    %184 = arith.addf %182, %183 : vector<2x32xf32>
    %185 = math.tanh %184 : vector<2x32xf32>
    %186 = arith.mulf %181, %185 : vector<2x32xf32>
    %187 = tpu.concatenate %186, %184 in 1 : vector<2x32xf32>, vector<2x32xf32> -> vector<2x64xf32>
    %cst_48 = arith.constant dense<0.000000e+00> : vector<2x32xf32>
    %188 = tpu.matmul %187, %5, %cst_48 {dimension_numbers = #tpu.dot_dimension_numbers<[1], [0], [0], [1], [0, 0, 1, 1], [], []>} : vector<2x64xf32>, vector<64x32xf32>, vector<2x32xf32> -> vector<2x32xf32>
    %189 = vector.broadcast %6 : vector<1x32xf32> to vector<2x32xf32>
    %190 = arith.addf %188, %189 : vector<2x32xf32>
    %191 = vector.shape_cast %190 : vector<2x32xf32> to vector<2x1x32xf32>
    %192 = vector.broadcast %191 : vector<2x1x32xf32> to vector<2x8x32xf32>
    %193 = arith.addf %4, %192 : vector<2x8x32xf32>
    %194 = math.tanh %193 : vector<2x8x32xf32>
    %195 = vector.shape_cast %8 : vector<32xf32> to vector<1x1x32xf32>
    %196 = vector.broadcast %195 : vector<1x1x32xf32> to vector<2x8x32xf32>
    %197 = arith.mulf %194, %196 : vector<2x8x32xf32>
    %cst_49 = arith.constant dense<0.000000e+00> : vector<2x8xf32>
    %198 = vector.multi_reduction <add>, %197, %cst_49 [2] : vector<2x8x32xf32> to vector<2x8xf32>
    %199 = vector.broadcast %12 : f32 to vector<2x8xf32>
    %200 = arith.addf %198, %199 : vector<2x8xf32>
    %cst_50 = arith.constant dense<0xFF800000> : vector<2xf32>
    %201 = vector.multi_reduction <maximumf>, %200, %cst_50 [1] : vector<2x8xf32> to vector<2xf32>
    %202 = vector.shape_cast %201 : vector<2xf32> to vector<2x1xf32>
    %203 = vector.broadcast %202 : vector<2x1xf32> to vector<2x8xf32>
    %204 = arith.subf %200, %203 : vector<2x8xf32>
    %205 = math.exp %204 : vector<2x8xf32>
    %cst_51 = arith.constant dense<0.000000e+00> : vector<2xf32>
    %206 = vector.multi_reduction <add>, %205, %cst_51 [1] : vector<2x8xf32> to vector<2xf32>
    %207 = vector.shape_cast %206 : vector<2xf32> to vector<2x1xf32>
    %208 = vector.broadcast %207 : vector<2x1xf32> to vector<2x8xf32>
    %209 = arith.divf %205, %208 : vector<2x8xf32>
    %210 = vector.shape_cast %209 : vector<2x8xf32> to vector<2x8x1xf32>
    %211 = vector.broadcast %210 : vector<2x8x1xf32> to vector<2x8x32xf32>
    %212 = arith.mulf %211, %0 : vector<2x8x32xf32>
    %cst_52 = arith.constant dense<0.000000e+00> : vector<2x32xf32>
    %213 = vector.multi_reduction <add>, %212, %cst_52 [1] : vector<2x8x32xf32> to vector<2x32xf32>
    %214 = tpu.concatenate %213, %186 in 1 : vector<2x32xf32>, vector<2x32xf32> -> vector<2x64xf32>
    %cst_53 = arith.constant dense<0.000000e+00> : vector<2x128xf32>
    %215 = tpu.matmul %214, %9, %cst_53 {dimension_numbers = #tpu.dot_dimension_numbers<[1], [0], [0], [1], [0, 0, 1, 1], [], []>} : vector<2x64xf32>, vector<64x128xf32>, vector<2x128xf32> -> vector<2x128xf32>
    %216 = vector.extract_strided_slice %10 {offsets = [3, 0, 0], sizes = [1, 2, 128], strides = [1, 1, 1]} : vector<7x2x128xf32> to vector<1x2x128xf32>
    %217 = vector.shape_cast %216 : vector<1x2x128xf32> to vector<2x128xf32>
    %218 = arith.addf %215, %217 : vector<2x128xf32>
    %219 = vector.extract_strided_slice %218 {offsets = [0, 0], sizes = [2, 32], strides = [1, 1]} : vector<2x128xf32> to vector<2x32xf32>
    %220 = arith.negf %219 : vector<2x32xf32>
    %221 = math.exp %220 : vector<2x32xf32>
    %cst_54 = arith.constant 1.000000e+00 : f32
    %222 = vector.broadcast %cst_54 : f32 to vector<2x32xf32>
    %223 = arith.addf %222, %221 : vector<2x32xf32>
    %224 = arith.divf %222, %223 : vector<2x32xf32>
    %225 = vector.extract_strided_slice %218 {offsets = [0, 32], sizes = [2, 32], strides = [1, 1]} : vector<2x128xf32> to vector<2x32xf32>
    %226 = arith.negf %225 : vector<2x32xf32>
    %227 = math.exp %226 : vector<2x32xf32>
    %cst_55 = arith.constant 1.000000e+00 : f32
    %228 = vector.broadcast %cst_55 : f32 to vector<2x32xf32>
    %229 = arith.addf %228, %227 : vector<2x32xf32>
    %230 = arith.divf %228, %229 : vector<2x32xf32>
    %231 = vector.extract_strided_slice %218 {offsets = [0, 64], sizes = [2, 32], strides = [1, 1]} : vector<2x128xf32> to vector<2x32xf32>
    %232 = math.tanh %231 : vector<2x32xf32>
    %233 = vector.extract_strided_slice %218 {offsets = [0, 96], sizes = [2, 32], strides = [1, 1]} : vector<2x128xf32> to vector<2x32xf32>
    %234 = arith.negf %233 : vector<2x32xf32>
    %235 = math.exp %234 : vector<2x32xf32>
    %cst_56 = arith.constant 1.000000e+00 : f32
    %236 = vector.broadcast %cst_56 : f32 to vector<2x32xf32>
    %237 = arith.addf %236, %235 : vector<2x32xf32>
    %238 = arith.divf %236, %237 : vector<2x32xf32>
    %239 = arith.mulf %230, %184 : vector<2x32xf32>
    %240 = arith.mulf %224, %232 : vector<2x32xf32>
    %241 = arith.addf %239, %240 : vector<2x32xf32>
    %242 = math.tanh %241 : vector<2x32xf32>
    %243 = arith.mulf %238, %242 : vector<2x32xf32>
    %244 = tpu.concatenate %243, %241 in 1 : vector<2x32xf32>, vector<2x32xf32> -> vector<2x64xf32>
    %cst_57 = arith.constant dense<0.000000e+00> : vector<2x32xf32>
    %245 = tpu.matmul %244, %5, %cst_57 {dimension_numbers = #tpu.dot_dimension_numbers<[1], [0], [0], [1], [0, 0, 1, 1], [], []>} : vector<2x64xf32>, vector<64x32xf32>, vector<2x32xf32> -> vector<2x32xf32>
    %246 = vector.broadcast %6 : vector<1x32xf32> to vector<2x32xf32>
    %247 = arith.addf %245, %246 : vector<2x32xf32>
    %248 = vector.shape_cast %247 : vector<2x32xf32> to vector<2x1x32xf32>
    %249 = vector.broadcast %248 : vector<2x1x32xf32> to vector<2x8x32xf32>
    %250 = arith.addf %4, %249 : vector<2x8x32xf32>
    %251 = math.tanh %250 : vector<2x8x32xf32>
    %252 = vector.shape_cast %8 : vector<32xf32> to vector<1x1x32xf32>
    %253 = vector.broadcast %252 : vector<1x1x32xf32> to vector<2x8x32xf32>
    %254 = arith.mulf %251, %253 : vector<2x8x32xf32>
    %cst_58 = arith.constant dense<0.000000e+00> : vector<2x8xf32>
    %255 = vector.multi_reduction <add>, %254, %cst_58 [2] : vector<2x8x32xf32> to vector<2x8xf32>
    %256 = vector.broadcast %12 : f32 to vector<2x8xf32>
    %257 = arith.addf %255, %256 : vector<2x8xf32>
    %cst_59 = arith.constant dense<0xFF800000> : vector<2xf32>
    %258 = vector.multi_reduction <maximumf>, %257, %cst_59 [1] : vector<2x8xf32> to vector<2xf32>
    %259 = vector.shape_cast %258 : vector<2xf32> to vector<2x1xf32>
    %260 = vector.broadcast %259 : vector<2x1xf32> to vector<2x8xf32>
    %261 = arith.subf %257, %260 : vector<2x8xf32>
    %262 = math.exp %261 : vector<2x8xf32>
    %cst_60 = arith.constant dense<0.000000e+00> : vector<2xf32>
    %263 = vector.multi_reduction <add>, %262, %cst_60 [1] : vector<2x8xf32> to vector<2xf32>
    %264 = vector.shape_cast %263 : vector<2xf32> to vector<2x1xf32>
    %265 = vector.broadcast %264 : vector<2x1xf32> to vector<2x8xf32>
    %266 = arith.divf %262, %265 : vector<2x8xf32>
    %267 = vector.shape_cast %266 : vector<2x8xf32> to vector<2x8x1xf32>
    %268 = vector.broadcast %267 : vector<2x8x1xf32> to vector<2x8x32xf32>
    %269 = arith.mulf %268, %0 : vector<2x8x32xf32>
    %cst_61 = arith.constant dense<0.000000e+00> : vector<2x32xf32>
    %270 = vector.multi_reduction <add>, %269, %cst_61 [1] : vector<2x8x32xf32> to vector<2x32xf32>
    %271 = tpu.concatenate %270, %243 in 1 : vector<2x32xf32>, vector<2x32xf32> -> vector<2x64xf32>
    %cst_62 = arith.constant dense<0.000000e+00> : vector<2x128xf32>
    %272 = tpu.matmul %271, %9, %cst_62 {dimension_numbers = #tpu.dot_dimension_numbers<[1], [0], [0], [1], [0, 0, 1, 1], [], []>} : vector<2x64xf32>, vector<64x128xf32>, vector<2x128xf32> -> vector<2x128xf32>
    %273 = vector.extract_strided_slice %10 {offsets = [4, 0, 0], sizes = [1, 2, 128], strides = [1, 1, 1]} : vector<7x2x128xf32> to vector<1x2x128xf32>
    %274 = vector.shape_cast %273 : vector<1x2x128xf32> to vector<2x128xf32>
    %275 = arith.addf %272, %274 : vector<2x128xf32>
    %276 = vector.extract_strided_slice %275 {offsets = [0, 0], sizes = [2, 32], strides = [1, 1]} : vector<2x128xf32> to vector<2x32xf32>
    %277 = arith.negf %276 : vector<2x32xf32>
    %278 = math.exp %277 : vector<2x32xf32>
    %cst_63 = arith.constant 1.000000e+00 : f32
    %279 = vector.broadcast %cst_63 : f32 to vector<2x32xf32>
    %280 = arith.addf %279, %278 : vector<2x32xf32>
    %281 = arith.divf %279, %280 : vector<2x32xf32>
    %282 = vector.extract_strided_slice %275 {offsets = [0, 32], sizes = [2, 32], strides = [1, 1]} : vector<2x128xf32> to vector<2x32xf32>
    %283 = arith.negf %282 : vector<2x32xf32>
    %284 = math.exp %283 : vector<2x32xf32>
    %cst_64 = arith.constant 1.000000e+00 : f32
    %285 = vector.broadcast %cst_64 : f32 to vector<2x32xf32>
    %286 = arith.addf %285, %284 : vector<2x32xf32>
    %287 = arith.divf %285, %286 : vector<2x32xf32>
    %288 = vector.extract_strided_slice %275 {offsets = [0, 64], sizes = [2, 32], strides = [1, 1]} : vector<2x128xf32> to vector<2x32xf32>
    %289 = math.tanh %288 : vector<2x32xf32>
    %290 = vector.extract_strided_slice %275 {offsets = [0, 96], sizes = [2, 32], strides = [1, 1]} : vector<2x128xf32> to vector<2x32xf32>
    %291 = arith.negf %290 : vector<2x32xf32>
    %292 = math.exp %291 : vector<2x32xf32>
    %cst_65 = arith.constant 1.000000e+00 : f32
    %293 = vector.broadcast %cst_65 : f32 to vector<2x32xf32>
    %294 = arith.addf %293, %292 : vector<2x32xf32>
    %295 = arith.divf %293, %294 : vector<2x32xf32>
    %296 = arith.mulf %287, %241 : vector<2x32xf32>
    %297 = arith.mulf %281, %289 : vector<2x32xf32>
    %298 = arith.addf %296, %297 : vector<2x32xf32>
    %299 = math.tanh %298 : vector<2x32xf32>
    %300 = arith.mulf %295, %299 : vector<2x32xf32>
    %301 = tpu.concatenate %300, %298 in 1 : vector<2x32xf32>, vector<2x32xf32> -> vector<2x64xf32>
    %cst_66 = arith.constant dense<0.000000e+00> : vector<2x32xf32>
    %302 = tpu.matmul %301, %5, %cst_66 {dimension_numbers = #tpu.dot_dimension_numbers<[1], [0], [0], [1], [0, 0, 1, 1], [], []>} : vector<2x64xf32>, vector<64x32xf32>, vector<2x32xf32> -> vector<2x32xf32>
    %303 = vector.broadcast %6 : vector<1x32xf32> to vector<2x32xf32>
    %304 = arith.addf %302, %303 : vector<2x32xf32>
    %305 = vector.shape_cast %304 : vector<2x32xf32> to vector<2x1x32xf32>
    %306 = vector.broadcast %305 : vector<2x1x32xf32> to vector<2x8x32xf32>
    %307 = arith.addf %4, %306 : vector<2x8x32xf32>
    %308 = math.tanh %307 : vector<2x8x32xf32>
    %309 = vector.shape_cast %8 : vector<32xf32> to vector<1x1x32xf32>
    %310 = vector.broadcast %309 : vector<1x1x32xf32> to vector<2x8x32xf32>
    %311 = arith.mulf %308, %310 : vector<2x8x32xf32>
    %cst_67 = arith.constant dense<0.000000e+00> : vector<2x8xf32>
    %312 = vector.multi_reduction <add>, %311, %cst_67 [2] : vector<2x8x32xf32> to vector<2x8xf32>
    %313 = vector.broadcast %12 : f32 to vector<2x8xf32>
    %314 = arith.addf %312, %313 : vector<2x8xf32>
    %cst_68 = arith.constant dense<0xFF800000> : vector<2xf32>
    %315 = vector.multi_reduction <maximumf>, %314, %cst_68 [1] : vector<2x8xf32> to vector<2xf32>
    %316 = vector.shape_cast %315 : vector<2xf32> to vector<2x1xf32>
    %317 = vector.broadcast %316 : vector<2x1xf32> to vector<2x8xf32>
    %318 = arith.subf %314, %317 : vector<2x8xf32>
    %319 = math.exp %318 : vector<2x8xf32>
    %cst_69 = arith.constant dense<0.000000e+00> : vector<2xf32>
    %320 = vector.multi_reduction <add>, %319, %cst_69 [1] : vector<2x8xf32> to vector<2xf32>
    %321 = vector.shape_cast %320 : vector<2xf32> to vector<2x1xf32>
    %322 = vector.broadcast %321 : vector<2x1xf32> to vector<2x8xf32>
    %323 = arith.divf %319, %322 : vector<2x8xf32>
    %324 = vector.shape_cast %323 : vector<2x8xf32> to vector<2x8x1xf32>
    %325 = vector.broadcast %324 : vector<2x8x1xf32> to vector<2x8x32xf32>
    %326 = arith.mulf %325, %0 : vector<2x8x32xf32>
    %cst_70 = arith.constant dense<0.000000e+00> : vector<2x32xf32>
    %327 = vector.multi_reduction <add>, %326, %cst_70 [1] : vector<2x8x32xf32> to vector<2x32xf32>
    %328 = tpu.concatenate %327, %300 in 1 : vector<2x32xf32>, vector<2x32xf32> -> vector<2x64xf32>
    %cst_71 = arith.constant dense<0.000000e+00> : vector<2x128xf32>
    %329 = tpu.matmul %328, %9, %cst_71 {dimension_numbers = #tpu.dot_dimension_numbers<[1], [0], [0], [1], [0, 0, 1, 1], [], []>} : vector<2x64xf32>, vector<64x128xf32>, vector<2x128xf32> -> vector<2x128xf32>
    %330 = vector.extract_strided_slice %10 {offsets = [5, 0, 0], sizes = [1, 2, 128], strides = [1, 1, 1]} : vector<7x2x128xf32> to vector<1x2x128xf32>
    %331 = vector.shape_cast %330 : vector<1x2x128xf32> to vector<2x128xf32>
    %332 = arith.addf %329, %331 : vector<2x128xf32>
    %333 = vector.extract_strided_slice %332 {offsets = [0, 0], sizes = [2, 32], strides = [1, 1]} : vector<2x128xf32> to vector<2x32xf32>
    %334 = arith.negf %333 : vector<2x32xf32>
    %335 = math.exp %334 : vector<2x32xf32>
    %cst_72 = arith.constant 1.000000e+00 : f32
    %336 = vector.broadcast %cst_72 : f32 to vector<2x32xf32>
    %337 = arith.addf %336, %335 : vector<2x32xf32>
    %338 = arith.divf %336, %337 : vector<2x32xf32>
    %339 = vector.extract_strided_slice %332 {offsets = [0, 32], sizes = [2, 32], strides = [1, 1]} : vector<2x128xf32> to vector<2x32xf32>
    %340 = arith.negf %339 : vector<2x32xf32>
    %341 = math.exp %340 : vector<2x32xf32>
    %cst_73 = arith.constant 1.000000e+00 : f32
    %342 = vector.broadcast %cst_73 : f32 to vector<2x32xf32>
    %343 = arith.addf %342, %341 : vector<2x32xf32>
    %344 = arith.divf %342, %343 : vector<2x32xf32>
    %345 = vector.extract_strided_slice %332 {offsets = [0, 64], sizes = [2, 32], strides = [1, 1]} : vector<2x128xf32> to vector<2x32xf32>
    %346 = math.tanh %345 : vector<2x32xf32>
    %347 = vector.extract_strided_slice %332 {offsets = [0, 96], sizes = [2, 32], strides = [1, 1]} : vector<2x128xf32> to vector<2x32xf32>
    %348 = arith.negf %347 : vector<2x32xf32>
    %349 = math.exp %348 : vector<2x32xf32>
    %cst_74 = arith.constant 1.000000e+00 : f32
    %350 = vector.broadcast %cst_74 : f32 to vector<2x32xf32>
    %351 = arith.addf %350, %349 : vector<2x32xf32>
    %352 = arith.divf %350, %351 : vector<2x32xf32>
    %353 = arith.mulf %344, %298 : vector<2x32xf32>
    %354 = arith.mulf %338, %346 : vector<2x32xf32>
    %355 = arith.addf %353, %354 : vector<2x32xf32>
    %356 = math.tanh %355 : vector<2x32xf32>
    %357 = arith.mulf %352, %356 : vector<2x32xf32>
    %358 = tpu.concatenate %357, %355 in 1 : vector<2x32xf32>, vector<2x32xf32> -> vector<2x64xf32>
    %cst_75 = arith.constant dense<0.000000e+00> : vector<2x32xf32>
    %359 = tpu.matmul %358, %5, %cst_75 {dimension_numbers = #tpu.dot_dimension_numbers<[1], [0], [0], [1], [0, 0, 1, 1], [], []>} : vector<2x64xf32>, vector<64x32xf32>, vector<2x32xf32> -> vector<2x32xf32>
    %360 = vector.broadcast %6 : vector<1x32xf32> to vector<2x32xf32>
    %361 = arith.addf %359, %360 : vector<2x32xf32>
    %362 = vector.shape_cast %361 : vector<2x32xf32> to vector<2x1x32xf32>
    %363 = vector.broadcast %362 : vector<2x1x32xf32> to vector<2x8x32xf32>
    %364 = arith.addf %4, %363 : vector<2x8x32xf32>
    %365 = math.tanh %364 : vector<2x8x32xf32>
    %366 = vector.shape_cast %8 : vector<32xf32> to vector<1x1x32xf32>
    %367 = vector.broadcast %366 : vector<1x1x32xf32> to vector<2x8x32xf32>
    %368 = arith.mulf %365, %367 : vector<2x8x32xf32>
    %cst_76 = arith.constant dense<0.000000e+00> : vector<2x8xf32>
    %369 = vector.multi_reduction <add>, %368, %cst_76 [2] : vector<2x8x32xf32> to vector<2x8xf32>
    %370 = vector.broadcast %12 : f32 to vector<2x8xf32>
    %371 = arith.addf %369, %370 : vector<2x8xf32>
    %cst_77 = arith.constant dense<0xFF800000> : vector<2xf32>
    %372 = vector.multi_reduction <maximumf>, %371, %cst_77 [1] : vector<2x8xf32> to vector<2xf32>
    %373 = vector.shape_cast %372 : vector<2xf32> to vector<2x1xf32>
    %374 = vector.broadcast %373 : vector<2x1xf32> to vector<2x8xf32>
    %375 = arith.subf %371, %374 : vector<2x8xf32>
    %376 = math.exp %375 : vector<2x8xf32>
    %cst_78 = arith.constant dense<0.000000e+00> : vector<2xf32>
    %377 = vector.multi_reduction <add>, %376, %cst_78 [1] : vector<2x8xf32> to vector<2xf32>
    %378 = vector.shape_cast %377 : vector<2xf32> to vector<2x1xf32>
    %379 = vector.broadcast %378 : vector<2x1xf32> to vector<2x8xf32>
    %380 = arith.divf %376, %379 : vector<2x8xf32>
    %381 = vector.shape_cast %380 : vector<2x8xf32> to vector<2x8x1xf32>
    %382 = vector.broadcast %381 : vector<2x8x1xf32> to vector<2x8x32xf32>
    %383 = arith.mulf %382, %0 : vector<2x8x32xf32>
    %cst_79 = arith.constant dense<0.000000e+00> : vector<2x32xf32>
    %384 = vector.multi_reduction <add>, %383, %cst_79 [1] : vector<2x8x32xf32> to vector<2x32xf32>
    %385 = tpu.concatenate %384, %357 in 1 : vector<2x32xf32>, vector<2x32xf32> -> vector<2x64xf32>
    %cst_80 = arith.constant dense<0.000000e+00> : vector<2x128xf32>
    %386 = tpu.matmul %385, %9, %cst_80 {dimension_numbers = #tpu.dot_dimension_numbers<[1], [0], [0], [1], [0, 0, 1, 1], [], []>} : vector<2x64xf32>, vector<64x128xf32>, vector<2x128xf32> -> vector<2x128xf32>
    %387 = vector.extract_strided_slice %10 {offsets = [6, 0, 0], sizes = [1, 2, 128], strides = [1, 1, 1]} : vector<7x2x128xf32> to vector<1x2x128xf32>
    %388 = vector.shape_cast %387 : vector<1x2x128xf32> to vector<2x128xf32>
    %389 = arith.addf %386, %388 : vector<2x128xf32>
    %390 = vector.extract_strided_slice %389 {offsets = [0, 0], sizes = [2, 32], strides = [1, 1]} : vector<2x128xf32> to vector<2x32xf32>
    %391 = arith.negf %390 : vector<2x32xf32>
    %392 = math.exp %391 : vector<2x32xf32>
    %cst_81 = arith.constant 1.000000e+00 : f32
    %393 = vector.broadcast %cst_81 : f32 to vector<2x32xf32>
    %394 = arith.addf %393, %392 : vector<2x32xf32>
    %395 = arith.divf %393, %394 : vector<2x32xf32>
    %396 = vector.extract_strided_slice %389 {offsets = [0, 32], sizes = [2, 32], strides = [1, 1]} : vector<2x128xf32> to vector<2x32xf32>
    %397 = arith.negf %396 : vector<2x32xf32>
    %398 = math.exp %397 : vector<2x32xf32>
    %cst_82 = arith.constant 1.000000e+00 : f32
    %399 = vector.broadcast %cst_82 : f32 to vector<2x32xf32>
    %400 = arith.addf %399, %398 : vector<2x32xf32>
    %401 = arith.divf %399, %400 : vector<2x32xf32>
    %402 = vector.extract_strided_slice %389 {offsets = [0, 64], sizes = [2, 32], strides = [1, 1]} : vector<2x128xf32> to vector<2x32xf32>
    %403 = math.tanh %402 : vector<2x32xf32>
    %404 = vector.extract_strided_slice %389 {offsets = [0, 96], sizes = [2, 32], strides = [1, 1]} : vector<2x128xf32> to vector<2x32xf32>
    %405 = arith.negf %404 : vector<2x32xf32>
    %406 = math.exp %405 : vector<2x32xf32>
    %cst_83 = arith.constant 1.000000e+00 : f32
    %407 = vector.broadcast %cst_83 : f32 to vector<2x32xf32>
    %408 = arith.addf %407, %406 : vector<2x32xf32>
    %409 = arith.divf %407, %408 : vector<2x32xf32>
    %410 = arith.mulf %401, %355 : vector<2x32xf32>
    %411 = arith.mulf %395, %403 : vector<2x32xf32>
    %412 = arith.addf %410, %411 : vector<2x32xf32>
    %413 = math.tanh %412 : vector<2x32xf32>
    %414 = arith.mulf %409, %413 : vector<2x32xf32>
    %415 = vector.extract_strided_slice %11 {offsets = [0, 0], sizes = [1, 32], strides = [1, 1]} : vector<1x64xf32> to vector<1x32xf32>
    %416 = vector.broadcast %415 : vector<1x32xf32> to vector<2x32xf32>
    %417 = arith.mulf %414, %416 : vector<2x32xf32>
    %cst_84 = arith.constant dense<0.000000e+00> : vector<2xf32>
    %418 = vector.multi_reduction <add>, %417, %cst_84 [1] : vector<2x32xf32> to vector<2xf32>
    %419 = vector.extract_strided_slice %11 {offsets = [0, 32], sizes = [1, 32], strides = [1, 1]} : vector<1x64xf32> to vector<1x32xf32>
    %420 = vector.broadcast %419 : vector<1x32xf32> to vector<2x32xf32>
    %421 = arith.mulf %384, %420 : vector<2x32xf32>
    %cst_85 = arith.constant dense<0.000000e+00> : vector<2xf32>
    %422 = vector.multi_reduction <add>, %421, %cst_85 [1] : vector<2x32xf32> to vector<2xf32>
    %423 = arith.addf %418, %422 : vector<2xf32>
    %424 = vector.broadcast %13 : f32 to vector<2xf32>
    %425 = arith.addf %423, %424 : vector<2xf32>
    %426 = vector.shape_cast %425 : vector<2xf32> to vector<2x1xf32>
    %c0_86 = arith.constant 0 : index
    %c0_87 = arith.constant 0 : index
    %427 = vector.load %arg10[%c0_86, %c0_87] : memref<2x1xf32, #tpu.memory_space<vmem>>, vector<2x1xf32>
    tpu.vector_store %arg10[%c0_86, %c0_87], %426 {strides = array<i32>} : memref<2x1xf32, #tpu.memory_space<vmem>>, vector<2x1xf32>,
    return
  }
}

</mosaic_0001>

<llo_original>
// kernel: tpu_custom_call.1
$region0: #{tpu_custom_call.1}
  #allocation0 [shape = 'u32[]', space=smem, size = 0x4, offset = 0x4, fixed_abs, tag = 'smem constant byte address 0x4 - core index']
  #allocation1 [shape = 'u32[72,128]{1,0:T(1,128)}', space=vmem, size = 0x9000, scoped, tag = 'internal scratch']
  #allocation2 [shape = 'f32[1]{0:T(128)S(6)}', space=smem, size = 0x200, scoped, tag = 'scoped memory for tpu_custom_call.1']
  #allocation3 [shape = 'f32[1]{0:T(128)S(6)}', space=smem, size = 0x200, scoped, tag = 'scoped memory for tpu_custom_call.1']
  %s0 = inlined_call_operand.hbm [shape: f32[2,8,32], index: 0, kind: input, shape index: {}]
  %s1 = inlined_call_operand.vmem [shape: f32[64,32], index: 1, kind: input, shape index: {}]
  %s2 = inlined_call_operand.vmem [shape: f32[32,32], index: 2, kind: input, shape index: {}]
  %s3 = inlined_call_operand.vmem [shape: f32[1,32], index: 3, kind: input, shape index: {}]
  %s4 = inlined_call_operand.vmem [shape: f32[1,32], index: 4, kind: input, shape index: {}]
  %s5 = inlined_call_operand.vmem [shape: f32[64,128], index: 5, kind: input, shape index: {}]
  %s6 = inlined_call_operand.hbm [shape: f32[7,2,128], index: 6, kind: input, shape index: {}]
  %s7 = inlined_call_operand.vmem [shape: f32[1,64], index: 7, kind: input, shape index: {}]
  %s8 = inlined_call_operand.<no memory space> [shape: f32[1], index: 8, kind: input, shape index: {}]
  %s9 = inlined_call_operand.<no memory space> [shape: f32[1], index: 9, kind: input, shape index: {}]
  %s10 = inlined_call_operand.vmem [shape: f32[2,1], index: 10, kind: output, shape index: {}]
  %s11 = sld [smem:[#allocation0]]
  $region58: #{tpu_custom_call.1} parent=0
    _
  %s13 = ssub.s32 1, %s11
  %s14 = scalar_select 0, %s13, %s11
  %15 = sst [smem:[#allocation2]] %s8
  %16 = sst [smem:[#allocation3]] %s9
  $region1: #{tpu_custom_call.1} parent=0
    #allocation4 [shape = 'u8[8192]{0}', space=vmem, size = 0x2000, scoped, tag = 'input window, operand 0, single buffered']
    #allocation5 [shape = 's32[1]{0}', space=sflag, size = 0x4, scoped, tag = 'scoped memory for tpu_custom_call.1']
    #allocation6 [shape = 'u8[7168]{0}', space=vmem, size = 0x1c00, scoped, tag = 'input window, operand 6, single buffered']
    #allocation7 [shape = 's32[1]{0}', space=sflag, size = 0x4, scoped, tag = 'scoped memory for tpu_custom_call.1']
    %17 = vsyncpa [#allocation5], 0
    %18 = vsyncpa [#allocation7], 0
    // Predicated region
    $region2: #{tpu_custom_call.1} parent=1 // pred_check
      _
    $region3: #{tpu_custom_call.1} parent=1 // pred_check_branch
      %20 = sbr.rel (0) target = $region5
    $region4: #{tpu_custom_call.1} parent=1 // pred_region
      %22 = vsyncadd [#allocation5], 0
      %s23 = sshll.u32 %s0, 4
      %s24 = int_to_ptr.hbm [resolvable:$true] %s23
      %s25 = sshll.u32 [#allocation4], 4
      %s26 = int_to_ptr.vmem [resolvable:$true] %s25
      %31 = dma.hbm_to_vmem [thread:$0]  %s24, 256, %s26, [#allocation5], 128, 128, 8
    $region5: #{tpu_custom_call.1} parent=1 // pred_fallthru
      _
    // Predicated region
    $region6: #{tpu_custom_call.1} parent=1 // pred_check
      _
    $region7: #{tpu_custom_call.1} parent=1 // pred_check_branch
      %33 = sbr.rel (0) target = $region9
    $region8: #{tpu_custom_call.1} parent=1 // pred_region
      _
    $region9: #{tpu_custom_call.1} parent=1 // pred_fallthru
      _
    // Predicated region
    $region10: #{tpu_custom_call.1} parent=1 // pred_check
      _
    $region11: #{tpu_custom_call.1} parent=1 // pred_check_branch
      %35 = sbr.rel (0) target = $region13
    $region12: #{tpu_custom_call.1} parent=1 // pred_region
      _
    $region13: #{tpu_custom_call.1} parent=1 // pred_fallthru
      _
    // Predicated region
    $region14: #{tpu_custom_call.1} parent=1 // pred_check
      _
    $region15: #{tpu_custom_call.1} parent=1 // pred_check_branch
      %37 = sbr.rel (0) target = $region17
    $region16: #{tpu_custom_call.1} parent=1 // pred_region
      _
    $region17: #{tpu_custom_call.1} parent=1 // pred_fallthru
      _
    // Predicated region
    $region18: #{tpu_custom_call.1} parent=1 // pred_check
      _
    $region19: #{tpu_custom_call.1} parent=1 // pred_check_branch
      %39 = sbr.rel (0) target = $region21
    $region20: #{tpu_custom_call.1} parent=1 // pred_region
      _
    $region21: #{tpu_custom_call.1} parent=1 // pred_fallthru
      _
    // Predicated region
    $region22: #{tpu_custom_call.1} parent=1 // pred_check
      _
    $region23: #{tpu_custom_call.1} parent=1 // pred_check_branch
      %41 = sbr.rel (0) target = $region25
    $region24: #{tpu_custom_call.1} parent=1 // pred_region
      _
    $region25: #{tpu_custom_call.1} parent=1 // pred_fallthru
      _
    // Predicated region
    $region26: #{tpu_custom_call.1} parent=1 // pred_check
      _
    $region27: #{tpu_custom_call.1} parent=1 // pred_check_branch
      %43 = sbr.rel (0) target = $region29
    $region28: #{tpu_custom_call.1} parent=1 // pred_region
      %45 = vsyncadd [#allocation7], 0
      %s46 = sshll.u32 %s6, 4
      %s47 = int_to_ptr.hbm [resolvable:$true] %s46
      %s48 = sshll.u32 [#allocation6], 4
      %s49 = int_to_ptr.vmem [resolvable:$true] %s48
      %54 = dma.hbm_to_vmem [thread:$0]  %s47, 224, %s49, [#allocation7], 32, 32, 2
    $region29: #{tpu_custom_call.1} parent=1 // pred_fallthru
      _
    // Predicated region
    $region30: #{tpu_custom_call.1} parent=1 // pred_check
      _
    $region31: #{tpu_custom_call.1} parent=1 // pred_check_branch
      %56 = sbr.rel (0) target = $region33
    $region32: #{tpu_custom_call.1} parent=1 // pred_region
      _
    $region33: #{tpu_custom_call.1} parent=1 // pred_fallthru
      _
    // Predicated region
    $region34: #{tpu_custom_call.1} parent=1 // pred_check
      _
    $region35: #{tpu_custom_call.1} parent=1 // pred_check_branch
      %58 = sbr.rel (0) target = $region37
    $region36: #{tpu_custom_call.1} parent=1 // pred_region
      _
    $region37: #{tpu_custom_call.1} parent=1 // pred_fallthru
      _
    // Predicated region
    $region38: #{tpu_custom_call.1} parent=1 // pred_check
      _
    $region39: #{tpu_custom_call.1} parent=1 // pred_check_branch
      %60 = sbr.rel (0) target = $region41
    $region40: #{tpu_custom_call.1} parent=1 // pred_region
      _
    $region41: #{tpu_custom_call.1} parent=1 // pred_fallthru
      _
    // Predicated region
    $region42: #{tpu_custom_call.1} parent=1 // pred_check
      _
    $region43: #{tpu_custom_call.1} parent=1 // pred_check_branch
      %62 = sbr.rel (0) target = $region45
    $region44: #{tpu_custom_call.1} parent=1 // pred_region
      %64 = dma.done [#allocation5], 256
    $region45: #{tpu_custom_call.1} parent=1 // pred_fallthru
      _
    // Predicated region
    $region46: #{tpu_custom_call.1} parent=1 // pred_check
      _
    $region47: #{tpu_custom_call.1} parent=1 // pred_check_branch
      %66 = sbr.rel (0) target = $region49
    $region48: #{tpu_custom_call.1} parent=1 // pred_region
      %68 = dma.done [#allocation7], 224
    $region49: #{tpu_custom_call.1} parent=1 // pred_fallthru
      _
    %v69 = vld [vmem:[#allocation4] sm:$0xff]
    %v70 = vld [vmem:[#allocation4 + $0x8] sm:$0xff]
    %v71 = vld [vmem:[%s2] sm:$0xff]
    %v72 = vld [vmem:[%s2 + $0x8] sm:$0xff]
    %v73 = vld [vmem:[%s2 + $0x10] sm:$0xff]
    %v74 = vld [vmem:[%s2 + $0x18] sm:$0xff]
    %vm75 = vcmask 261120
    %v77 = vsel %vm75, %v69, 0
    %v80 = vsel %vm75, %v70, 0
    %82 = vmatpush.msra.mxu0 0.0
    %83 = vmatpush.msra.mxu0 0.0
    %84 = vmatpush.msra.mxu0 0.0
    %85 = vmatpush.msra.mxu0 0.0
    %86 = vmatpush.msra.mxu0 0.0
    %87 = vmatpush.msra.mxu0 0.0
    %88 = vmatpush.msra.mxu0 0.0
    %89 = vmatpush.msra.mxu0 0.0
    %90 = vmatpush.msra.mxu0 0.0
    %91 = vmatpush.msra.mxu0 0.0
    %92 = vmatpush.msra.mxu0 0.0
    %93 = vmatpush.msra.mxu0 0.0
    %94 = vmatpush.msra.mxu0 %v74
    %95 = vmatpush.msra.mxu0 %v73
    %96 = vmatpush.msra.mxu0 %v72
    %97 = vmatpush.msra.mxu0 %v71
    %98 = vmatmul.f32.gmra.mxu0 %v77
    %v99 = vpop.f32.mrf.mxu0
    %v100 = vadd.f32 0.0, %v99
    %101 = vmatmul.f32.gmra.mxu0 %v80
    %v102 = vpop.f32.mrf.mxu0
    %v103 = vadd.f32 0.0, %v102
    %104 = vdwg.mxu0
    %v105 = vld [vmem:[%s1] sm:$0xff]
    %v106 = vld [vmem:[%s1 + $0x8] sm:$0xff]
    %v107 = vld [vmem:[%s1 + $0x10] sm:$0xff]
    %v108 = vld [vmem:[%s1 + $0x18] sm:$0xff]
    %v109 = vld [vmem:[%s1 + $0x20] sm:$0xff]
    %v110 = vld [vmem:[%s1 + $0x28] sm:$0xff]
    %v111 = vld [vmem:[%s1 + $0x30] sm:$0xff]
    %v112 = vld [vmem:[%s1 + $0x38] sm:$0xff]
    %v113 = vld [vmem:[%s3] sm:$0x1]
    %v114 = vld [vmem:[%s4] sm:$0x1]
    %v115 = vld [vmem:[%s5] sm:$0xff]
    %v116 = vld [vmem:[%s5 + $0x8] sm:$0xff]
    %v117 = vld [vmem:[%s5 + $0x10] sm:$0xff]
    %v118 = vld [vmem:[%s5 + $0x18] sm:$0xff]
    %v119 = vld [vmem:[%s5 + $0x20] sm:$0xff]
    %v120 = vld [vmem:[%s5 + $0x28] sm:$0xff]
    %v121 = vld [vmem:[%s5 + $0x30] sm:$0xff]
    %v122 = vld [vmem:[%s5 + $0x38] sm:$0xff]
    %v123 = vld [vmem:[#allocation6] sm:$0x3]
    %v124 = vld [vmem:[#allocation6 + $0x2] sm:$0x3]
    %v125 = vld [vmem:[#allocation6 + $0x4] sm:$0x3]
    %v126 = vld [vmem:[#allocation6 + $0x6] sm:$0x3]
    %v127 = vld [vmem:[#allocation6 + $0x8] sm:$0x3]
    %v128 = vld [vmem:[#allocation6 + $0xa] sm:$0x3]
    %v129 = vld [vmem:[#allocation6 + $0xc] sm:$0x3]
    %v130 = vld [vmem:[%s7] sm:$0x1]
    %s131 = sld [smem:[#allocation2]]
    %s132 = sld [smem:[#allocation3]]
    %v134 = vperm.slane %v113, 0
    %vm136 = vcmask 523264
    %v138 = vsel %vm136, 0.0, 0
    %140 = vmatpush.msra.mxu0 0.0
    %141 = vmatpush.msra.mxu0 0.0
    %142 = vmatpush.msra.mxu0 0.0
    %143 = vmatpush.msra.mxu0 0.0
    %144 = vmatpush.msra.mxu0 0.0
    %145 = vmatpush.msra.mxu0 0.0
    %146 = vmatpush.msra.mxu0 0.0
    %147 = vmatpush.msra.mxu0 0.0
    %148 = vmatpush.msra.mxu0 %v112
    %149 = vmatpush.msra.mxu0 %v111
    %150 = vmatpush.msra.mxu0 %v110
    %151 = vmatpush.msra.mxu0 %v109
    %152 = vmatpush.msra.mxu0 %v108
    %153 = vmatpush.msra.mxu0 %v107
    %154 = vmatpush.msra.mxu0 %v106
    %155 = vmatpush.msra.mxu0 %v105
    %156 = vmatmul.f32.gmra.mxu0 %v138
    %v157 = vpop.f32.mrf.mxu0
    %v158 = vadd.f32 %v134, %v157
    %159 = vdwg.mxu0
    %v161 = vrot.slane %v158, 1
    %v162 = vperm.slane %v158, 0
    %v163 = vperm.slane %v161, 0
    %v166 = vadd.f32 %v100, %v162
    %v167 = vadd.f32 %v103, %v163
    %v168 = vtanh.pop %v166
    %v169 = vtanh.pop %v167
    %v171 = vperm.slane %v114, 0
    %v173 = vmul.f32 %v168, %v171
    %v174 = vmul.f32 %v169, %v171
    %v175 = vsel %vm75, %v173, 0.0
    %176 = vadd.xlane.f32.xlu0 %v175
    %v177 = vpop.xlane.xlu0 %176
    %v178 = vsel %vm75, %v174, 0.0
    %179 = vadd.xlane.f32.xlu0 %v178
    %v180 = vpop.xlane.xlu0 %179
    %v181 = vstv %s131
    %v182 = vadd.f32 %v177, %v181
    %v183 = vadd.f32 %v180, %v181
    %v186 = vlaneseq
    %v187 = vand.u32 %v186, 127
    %v188 = vperm.slane %v182, %v187
    %v189 = vperm.slane %v183, %v187
    %vm190 = vcmask 1041409
    %v191 = vsel %vm190, %v189, %v188
    %vm193 = vcmask 58368
    %v194 = vsel %vm193, %v191, -inf
    %195 = vmax.xlane.f32.xlu0 %v194
    %v196 = vpop.xlane.xlu0 %195
    %v198 = vperm.slane %v196, 0
    %v199 = vperm.slane %v196, 1
    %v202 = vsub.f32 %v182, %v198
    %v203 = vsub.f32 %v183, %v199
    %v204 = vmul.f32 %v202, 1.442695
    %v205 = vpow.pop %v204
    %v206 = vmul.f32 %v203, 1.442695
    %v207 = vpow.pop %v206
    %210 = vset.pattern.permute.xlu0 0
    %211 = vperm.xlu0 %210, %v205
    %v212 = vpop.permute.xlu0 %211
    %213 = vset.pattern.permute.xlu0 0
    %214 = vperm.xlu0 %213, %v207
    %v215 = vpop.permute.xlu0 %214
    %v216 = vperm.slane %v212, %v187
    %v217 = vperm.slane %v215, %v187
    %v218 = vsel %vm190, %v217, %v216
    %v220 = vsel %vm193, %v218, 0.0
    %221 = vadd.xlane.f32.xlu0 %v220
    %v222 = vpop.xlane.xlu0 %221
    %v224 = vperm.slane %v222, 0
    %v225 = vperm.slane %v222, 1
    %v228 = vrcp.pop %v224
    %v229 = vmul.f32 %v224, %v228
    %v230 = vsub.f32 1.0, %v229
    %v231 = vmul.f32 %v228, %v230
    %v232 = vadd.f32 %v228, %v231
    %vm233 = vweird.f32 %v224
    %vm234 = vweird.f32 %v228
    %vm235 = vmor %vm233, %vm234
    %v236 = vsel %vm235, %v228, %v232
    %v237 = vand.u32 2147483647, %v224
    %vm238 = vcmp.eq.f32.partialorder %v237, 8.507059e+37
    %v239 = vand.u32 %v224, 2147483648
    %v240 = vor.u32 1.1754944e-38, %v239
    %v241 = vsel %vm238, %v240, %v236
    %v242 = vmul.f32 %v205, %v241
    %v243 = vrcp.pop %v225
    %v244 = vmul.f32 %v225, %v243
    %v245 = vsub.f32 1.0, %v244
    %v246 = vmul.f32 %v243, %v245
    %v247 = vadd.f32 %v243, %v246
    %vm248 = vweird.f32 %v225
    %vm249 = vweird.f32 %v243
    %vm250 = vmor %vm248, %vm249
    %v251 = vsel %vm250, %v243, %v247
    %v252 = vand.u32 2147483647, %v225
    %vm253 = vcmp.eq.f32.partialorder %v252, 8.507059e+37
    %v254 = vand.u32 %v225, 2147483648
    %v255 = vor.u32 1.1754944e-38, %v254
    %v256 = vsel %vm253, %v255, %v251
    %v257 = vmul.f32 %v207, %v256
    %259 = vset.pattern.permute.xlu0 0
    %260 = vperm.xlu0 %259, %v242
    %v261 = vpop.permute.xlu0 %260
    %264 = vset.pattern.permute.xlu0 0
    %265 = vperm.xlu0 %264, %v257
    %v266 = vpop.permute.xlu0 %265
    %v268 = vmul.f32 %v261, %v69
    %v269 = vmul.f32 %v266, %v70
    %v270 = vsel %vm75, %v268, 0.0
    %v271 = vrot.slane %v270, 4
    %v272 = vadd.f32 %v270, %v271
    %v273 = vrot.slane %v272, 2
    %v274 = vadd.f32 %v272, %v273
    %v275 = vrot.slane %v274, 1
    %v276 = vadd.f32 %v274, %v275
    %v277 = vsel %vm75, %v269, 0.0
    %v278 = vrot.slane %v277, 4
    %v279 = vadd.f32 %v277, %v278
    %v280 = vrot.slane %v279, 2
    %v281 = vadd.f32 %v279, %v280
    %v282 = vrot.slane %v281, 1
    %v283 = vadd.f32 %v281, %v282
    %v286 = vsel %vm190, %v283, %v276
    %v288 = vsel %vm75, %v286, 0.0
    %v290 = vsel %vm136, %v288, 0
    %292 = vmatpush.msra.mxu0 0.0
    %293 = vmatpush.msra.mxu0 0.0
    %294 = vmatpush.msra.mxu0 0.0
    %295 = vmatpush.msra.mxu0 0.0
    %296 = vmatpush.msra.mxu0 0.0
    %297 = vmatpush.msra.mxu0 0.0
    %298 = vmatpush.msra.mxu0 0.0
    %299 = vmatpush.msra.mxu0 0.0
    %300 = vmatpush.msra.mxu0 %v122
    %301 = vmatpush.msra.mxu0 %v121
    %302 = vmatpush.msra.mxu0 %v120
    %303 = vmatpush.msra.mxu0 %v119
    %304 = vmatpush.msra.mxu0 %v118
    %305 = vmatpush.msra.mxu0 %v117
    %306 = vmatpush.msra.mxu0 %v116
    %307 = vmatpush.msra.mxu0 %v115
    %308 = vmatmul.f32.gmra.mxu0 %v290
    %v309 = vpop.f32.mrf.mxu0
    %v310 = vadd.f32 %v123, %v309
    %311 = vdwg.mxu0
    %v312 = vxor.u32 %v310, 2147483648
    %v313 = vmul.f32 %v312, 1.442695
    %v314 = vpow.pop %v313
    %v315 = vadd.f32 %v314, 1.0
    %v316 = vrcp.pop %v315
    %v317 = vmul.f32 %v315, %v316
    %v318 = vsub.f32 1.0, %v317
    %v319 = vmul.f32 %v316, %v318
    %v320 = vadd.f32 %v316, %v319
    %vm321 = vweird.f32 %v315
    %vm322 = vweird.f32 %v316
    %vm323 = vmor %vm321, %vm322
    %v324 = vsel %vm323, %v316, %v320
    %v325 = vand.u32 2147483647, %v315
    %vm326 = vcmp.eq.f32.partialorder %v325, 8.507059e+37
    %v327 = vand.u32 %v315, 2147483648
    %v328 = vor.u32 1.1754944e-38, %v327
    %v329 = vsel %vm326, %v328, %v324
    %v330 = vmul.f32 1.0, %v329
    %v331 = vtanh.pop %v310
    %v332 = vmul.f32 %v330, 0.0
    %334 = vrot.lane.b32.xlu0 %v331, 64
    %v335 = vpop.permute.xlu0 %334
    %v337 = vmul.f32 %v330, %v335
    %339 = vrot.lane.b32.xlu0 %v337, 32
    %v340 = vpop.permute.xlu0 %339
    %v342 = vadd.f32 %v332, %v340
    %v343 = vtanh.pop %v342
    %345 = vrot.lane.b32.xlu0 %v343, 64
    %v346 = vpop.permute.xlu0 %345
    %v348 = vmul.f32 %v330, %v346
    %350 = vrot.lane.b32.xlu0 %v348, 32
    %v351 = vpop.permute.xlu0 %350
    %v353 = vsel %vm75, %v351, %v342
    %v355 = vsel %vm136, %v353, 0
    %357 = vmatpush.msra.mxu0 0.0
    %358 = vmatpush.msra.mxu0 0.0
    %359 = vmatpush.msra.mxu0 0.0
    %360 = vmatpush.msra.mxu0 0.0
    %361 = vmatpush.msra.mxu0 0.0
    %362 = vmatpush.msra.mxu0 0.0
    %363 = vmatpush.msra.mxu0 0.0
    %364 = vmatpush.msra.mxu0 0.0
    %365 = vmatpush.msra.mxu0 %v112
    %366 = vmatpush.msra.mxu0 %v111
    %367 = vmatpush.msra.mxu0 %v110
    %368 = vmatpush.msra.mxu0 %v109
    %369 = vmatpush.msra.mxu0 %v108
    %370 = vmatpush.msra.mxu0 %v107
    %371 = vmatpush.msra.mxu0 %v106
    %372 = vmatpush.msra.mxu0 %v105
    %373 = vmatmul.f32.gmra.mxu0 %v355
    %v374 = vpop.f32.mrf.mxu0
    %v375 = vadd.f32 %v134, %v374
    %376 = vdwg.mxu0
    %v378 = vrot.slane %v375, 1
    %v379 = vperm.slane %v375, 0
    %v380 = vperm.slane %v378, 0
    %v383 = vadd.f32 %v100, %v379
    %v384 = vadd.f32 %v103, %v380
    %v385 = vtanh.pop %v383
    %v386 = vtanh.pop %v384
    %v387 = vmul.f32 %v385, %v171
    %v388 = vmul.f32 %v386, %v171
    %v389 = vsel %vm75, %v387, 0.0
    %390 = vadd.xlane.f32.xlu0 %v389
    %v391 = vpop.xlane.xlu0 %390
    %v392 = vsel %vm75, %v388, 0.0
    %393 = vadd.xlane.f32.xlu0 %v392
    %v394 = vpop.xlane.xlu0 %393
    %v395 = vadd.f32 %v391, %v181
    %v396 = vadd.f32 %v394, %v181
    %v399 = vperm.slane %v395, %v187
    %v400 = vperm.slane %v396, %v187
    %v401 = vsel %vm190, %v400, %v399
    %v403 = vsel %vm193, %v401, -inf
    %404 = vmax.xlane.f32.xlu0 %v403
    %v405 = vpop.xlane.xlu0 %404
    %v407 = vperm.slane %v405, 0
    %v408 = vperm.slane %v405, 1
    %v411 = vsub.f32 %v395, %v407
    %v412 = vsub.f32 %v396, %v408
    %v413 = vmul.f32 %v411, 1.442695
    %v414 = vpow.pop %v413
    %v415 = vmul.f32 %v412, 1.442695
    %v416 = vpow.pop %v415
    %419 = vset.pattern.permute.xlu0 0
    %420 = vperm.xlu0 %419, %v414
    %v421 = vpop.permute.xlu0 %420
    %422 = vset.pattern.permute.xlu0 0
    %423 = vperm.xlu0 %422, %v416
    %v424 = vpop.permute.xlu0 %423
    %v425 = vperm.slane %v421, %v187
    %v426 = vperm.slane %v424, %v187
    %v427 = vsel %vm190, %v426, %v425
    %v429 = vsel %vm193, %v427, 0.0
    %430 = vadd.xlane.f32.xlu0 %v429
    %v431 = vpop.xlane.xlu0 %430
    %v433 = vperm.slane %v431, 0
    %v434 = vperm.slane %v431, 1
    %v437 = vrcp.pop %v433
    %v438 = vmul.f32 %v433, %v437
    %v439 = vsub.f32 1.0, %v438
    %v440 = vmul.f32 %v437, %v439
    %v441 = vadd.f32 %v437, %v440
    %vm442 = vweird.f32 %v433
    %vm443 = vweird.f32 %v437
    %vm444 = vmor %vm442, %vm443
    %v445 = vsel %vm444, %v437, %v441
    %v446 = vand.u32 2147483647, %v433
    %vm447 = vcmp.eq.f32.partialorder %v446, 8.507059e+37
    %v448 = vand.u32 %v433, 2147483648
    %v449 = vor.u32 1.1754944e-38, %v448
    %v450 = vsel %vm447, %v449, %v445
    %v451 = vmul.f32 %v414, %v450
    %v452 = vrcp.pop %v434
    %v453 = vmul.f32 %v434, %v452
    %v454 = vsub.f32 1.0, %v453
    %v455 = vmul.f32 %v452, %v454
    %v456 = vadd.f32 %v452, %v455
    %vm457 = vweird.f32 %v434
    %vm458 = vweird.f32 %v452
    %vm459 = vmor %vm457, %vm458
    %v460 = vsel %vm459, %v452, %v456
    %v461 = vand.u32 2147483647, %v434
    %vm462 = vcmp.eq.f32.partialorder %v461, 8.507059e+37
    %v463 = vand.u32 %v434, 2147483648
    %v464 = vor.u32 1.1754944e-38, %v463
    %v465 = vsel %vm462, %v464, %v460
    %v466 = vmul.f32 %v416, %v465
    %468 = vset.pattern.permute.xlu0 0
    %469 = vperm.xlu0 %468, %v451
    %v470 = vpop.permute.xlu0 %469
    %473 = vset.pattern.permute.xlu0 0
    %474 = vperm.xlu0 %473, %v466
    %v475 = vpop.permute.xlu0 %474
    %v477 = vmul.f32 %v470, %v69
    %v478 = vmul.f32 %v475, %v70
    %v479 = vsel %vm75, %v477, 0.0
    %v480 = vrot.slane %v479, 4
    %v481 = vadd.f32 %v479, %v480
    %v482 = vrot.slane %v481, 2
    %v483 = vadd.f32 %v481, %v482
    %v484 = vrot.slane %v483, 1
    %v485 = vadd.f32 %v483, %v484
    %v486 = vsel %vm75, %v478, 0.0
    %v487 = vrot.slane %v486, 4
    %v488 = vadd.f32 %v486, %v487
    %v489 = vrot.slane %v488, 2
    %v490 = vadd.f32 %v488, %v489
    %v491 = vrot.slane %v490, 1
    %v492 = vadd.f32 %v490, %v491
    %v495 = vsel %vm190, %v492, %v485
    %497 = vrot.lane.b32.xlu0 %v348, 64
    %v498 = vpop.permute.xlu0 %497
    %v500 = vsel %vm75, %v495, %v498
    %v502 = vsel %vm136, %v500, 0
    %504 = vmatpush.msra.mxu0 0.0
    %505 = vmatpush.msra.mxu0 0.0
    %506 = vmatpush.msra.mxu0 0.0
    %507 = vmatpush.msra.mxu0 0.0
    %508 = vmatpush.msra.mxu0 0.0
    %509 = vmatpush.msra.mxu0 0.0
    %510 = vmatpush.msra.mxu0 0.0
    %511 = vmatpush.msra.mxu0 0.0
    %512 = vmatpush.msra.mxu0 %v122
    %513 = vmatpush.msra.mxu0 %v121
    %514 = vmatpush.msra.mxu0 %v120
    %515 = vmatpush.msra.mxu0 %v119
    %516 = vmatpush.msra.mxu0 %v118
    %517 = vmatpush.msra.mxu0 %v117
    %518 = vmatpush.msra.mxu0 %v116
    %519 = vmatpush.msra.mxu0 %v115
    %520 = vmatmul.f32.gmra.mxu0 %v502
    %v521 = vpop.f32.mrf.mxu0
    %v522 = vadd.f32 %v124, %v521
    %523 = vdwg.mxu0
    %v524 = vxor.u32 %v522, 2147483648
    %v525 = vmul.f32 %v524, 1.442695
    %v526 = vpow.pop %v525
    %v527 = vadd.f32 %v526, 1.0
    %v528 = vrcp.pop %v527
    %v529 = vmul.f32 %v527, %v528
    %v530 = vsub.f32 1.0, %v529
    %v531 = vmul.f32 %v528, %v530
    %v532 = vadd.f32 %v528, %v531
    %vm533 = vweird.f32 %v527
    %vm534 = vweird.f32 %v528
    %vm535 = vmor %vm533, %vm534
    %v536 = vsel %vm535, %v528, %v532
    %v537 = vand.u32 2147483647, %v527
    %vm538 = vcmp.eq.f32.partialorder %v537, 8.507059e+37
    %v539 = vand.u32 %v527, 2147483648
    %v540 = vor.u32 1.1754944e-38, %v539
    %v541 = vsel %vm538, %v540, %v536
    %v542 = vmul.f32 1.0, %v541
    %v543 = vtanh.pop %v522
    %v544 = vmul.f32 %v542, %v342
    %546 = vrot.lane.b32.xlu0 %v543, 64
    %v547 = vpop.permute.xlu0 %546
    %v549 = vmul.f32 %v542, %v547
    %551 = vrot.lane.b32.xlu0 %v549, 32
    %v552 = vpop.permute.xlu0 %551
    %v554 = vadd.f32 %v544, %v552
    %v555 = vtanh.pop %v554
    %557 = vrot.lane.b32.xlu0 %v555, 64
    %v558 = vpop.permute.xlu0 %557
    %v560 = vmul.f32 %v542, %v558
    %562 = vrot.lane.b32.xlu0 %v560, 32
    %v563 = vpop.permute.xlu0 %562
    %v565 = vsel %vm75, %v563, %v554
    %v567 = vsel %vm136, %v565, 0
    %569 = vmatpush.msra.mxu0 0.0
    %570 = vmatpush.msra.mxu0 0.0
    %571 = vmatpush.msra.mxu0 0.0
    %572 = vmatpush.msra.mxu0 0.0
    %573 = vmatpush.msra.mxu0 0.0
    %574 = vmatpush.msra.mxu0 0.0
    %575 = vmatpush.msra.mxu0 0.0
    %576 = vmatpush.msra.mxu0 0.0
    %577 = vmatpush.msra.mxu0 %v112
    %578 = vmatpush.msra.mxu0 %v111
    %579 = vmatpush.msra.mxu0 %v110
    %580 = vmatpush.msra.mxu0 %v109
    %581 = vmatpush.msra.mxu0 %v108
    %582 = vmatpush.msra.mxu0 %v107
    %583 = vmatpush.msra.mxu0 %v106
    %584 = vmatpush.msra.mxu0 %v105
    %585 = vmatmul.f32.gmra.mxu0 %v567
    %v586 = vpop.f32.mrf.mxu0
    %v587 = vadd.f32 %v134, %v586
    %588 = vdwg.mxu0
    %v590 = vrot.slane %v587, 1
    %v591 = vperm.slane %v587, 0
    %v592 = vperm.slane %v590, 0
    %v595 = vadd.f32 %v100, %v591
    %v596 = vadd.f32 %v103, %v592
    %v597 = vtanh.pop %v595
    %v598 = vtanh.pop %v596
    %v599 = vmul.f32 %v597, %v171
    %v600 = vmul.f32 %v598, %v171
    %v601 = vsel %vm75, %v599, 0.0
    %602 = vadd.xlane.f32.xlu0 %v601
    %v603 = vpop.xlane.xlu0 %602
    %v604 = vsel %vm75, %v600, 0.0
    %605 = vadd.xlane.f32.xlu0 %v604
    %v606 = vpop.xlane.xlu0 %605
    %v607 = vadd.f32 %v603, %v181
    %v608 = vadd.f32 %v606, %v181
    %v611 = vperm.slane %v607, %v187
    %v612 = vperm.slane %v608, %v187
    %v613 = vsel %vm190, %v612, %v611
    %v615 = vsel %vm193, %v613, -inf
    %616 = vmax.xlane.f32.xlu0 %v615
    %v617 = vpop.xlane.xlu0 %616
    %v619 = vperm.slane %v617, 0
    %v620 = vperm.slane %v617, 1
    %v623 = vsub.f32 %v607, %v619
    %v624 = vsub.f32 %v608, %v620
    %v625 = vmul.f32 %v623, 1.442695
    %v626 = vpow.pop %v625
    %v627 = vmul.f32 %v624, 1.442695
    %v628 = vpow.pop %v627
    %631 = vset.pattern.permute.xlu0 0
    %632 = vperm.xlu0 %631, %v626
    %v633 = vpop.permute.xlu0 %632
    %634 = vset.pattern.permute.xlu0 0
    %635 = vperm.xlu0 %634, %v628
    %v636 = vpop.permute.xlu0 %635
    %v637 = vperm.slane %v633, %v187
    %v638 = vperm.slane %v636, %v187
    %v639 = vsel %vm190, %v638, %v637
    %v641 = vsel %vm193, %v639, 0.0
    %642 = vadd.xlane.f32.xlu0 %v641
    %v643 = vpop.xlane.xlu0 %642
    %v645 = vperm.slane %v643, 0
    %v646 = vperm.slane %v643, 1
    %v649 = vrcp.pop %v645
    %v650 = vmul.f32 %v645, %v649
    %v651 = vsub.f32 1.0, %v650
    %v652 = vmul.f32 %v649, %v651
    %v653 = vadd.f32 %v649, %v652
    %vm654 = vweird.f32 %v645
    %vm655 = vweird.f32 %v649
    %vm656 = vmor %vm654, %vm655
    %v657 = vsel %vm656, %v649, %v653
    %v658 = vand.u32 2147483647, %v645
    %vm659 = vcmp.eq.f32.partialorder %v658, 8.507059e+37
    %v660 = vand.u32 %v645, 2147483648
    %v661 = vor.u32 1.1754944e-38, %v660
    %v662 = vsel %vm659, %v661, %v657
    %v663 = vmul.f32 %v626, %v662
    %v664 = vrcp.pop %v646
    %v665 = vmul.f32 %v646, %v664
    %v666 = vsub.f32 1.0, %v665
    %v667 = vmul.f32 %v664, %v666
    %v668 = vadd.f32 %v664, %v667
    %vm669 = vweird.f32 %v646
    %vm670 = vweird.f32 %v664
    %vm671 = vmor %vm669, %vm670
    %v672 = vsel %vm671, %v664, %v668
    %v673 = vand.u32 2147483647, %v646
    %vm674 = vcmp.eq.f32.partialorder %v673, 8.507059e+37
    %v675 = vand.u32 %v646, 2147483648
    %v676 = vor.u32 1.1754944e-38, %v675
    %v677 = vsel %vm674, %v676, %v672
    %v678 = vmul.f32 %v628, %v677
    %680 = vset.pattern.permute.xlu0 0
    %681 = vperm.xlu0 %680, %v663
    %v682 = vpop.permute.xlu0 %681
    %685 = vset.pattern.permute.xlu0 0
    %686 = vperm.xlu0 %685, %v678
    %v687 = vpop.permute.xlu0 %686
    %v689 = vmul.f32 %v682, %v69
    %v690 = vmul.f32 %v687, %v70
    %v691 = vsel %vm75, %v689, 0.0
    %v692 = vrot.slane %v691, 4
    %v693 = vadd.f32 %v691, %v692
    %v694 = vrot.slane %v693, 2
    %v695 = vadd.f32 %v693, %v694
    %v696 = vrot.slane %v695, 1
    %v697 = vadd.f32 %v695, %v696
    %v698 = vsel %vm75, %v690, 0.0
    %v699 = vrot.slane %v698, 4
    %v700 = vadd.f32 %v698, %v699
    %v701 = vrot.slane %v700, 2
    %v702 = vadd.f32 %v700, %v701
    %v703 = vrot.slane %v702, 1
    %v704 = vadd.f32 %v702, %v703
    %v707 = vsel %vm190, %v704, %v697
    %709 = vrot.lane.b32.xlu0 %v560, 64
    %v710 = vpop.permute.xlu0 %709
    %v712 = vsel %vm75, %v707, %v710
    %v714 = vsel %vm136, %v712, 0
    %716 = vmatpush.msra.mxu0 0.0
    %717 = vmatpush.msra.mxu0 0.0
    %718 = vmatpush.msra.mxu0 0.0
    %719 = vmatpush.msra.mxu0 0.0
    %720 = vmatpush.msra.mxu0 0.0
    %721 = vmatpush.msra.mxu0 0.0
    %722 = vmatpush.msra.mxu0 0.0
    %723 = vmatpush.msra.mxu0 0.0
    %724 = vmatpush.msra.mxu0 %v122
    %725 = vmatpush.msra.mxu0 %v121
    %726 = vmatpush.msra.mxu0 %v120
    %727 = vmatpush.msra.mxu0 %v119
    %728 = vmatpush.msra.mxu0 %v118
    %729 = vmatpush.msra.mxu0 %v117
    %730 = vmatpush.msra.mxu0 %v116
    %731 = vmatpush.msra.mxu0 %v115
    %732 = vmatmul.f32.gmra.mxu0 %v714
    %v733 = vpop.f32.mrf.mxu0
    %v734 = vadd.f32 %v125, %v733
    %735 = vdwg.mxu0
    %v736 = vxor.u32 %v734, 2147483648
    %v737 = vmul.f32 %v736, 1.442695
    %v738 = vpow.pop %v737
    %v739 = vadd.f32 %v738, 1.0
    %v740 = vrcp.pop %v739
    %v741 = vmul.f32 %v739, %v740
    %v742 = vsub.f32 1.0, %v741
    %v743 = vmul.f32 %v740, %v742
    %v744 = vadd.f32 %v740, %v743
    %vm745 = vweird.f32 %v739
    %vm746 = vweird.f32 %v740
    %vm747 = vmor %vm745, %vm746
    %v748 = vsel %vm747, %v740, %v744
    %v749 = vand.u32 2147483647, %v739
    %vm750 = vcmp.eq.f32.partialorder %v749, 8.507059e+37
    %v751 = vand.u32 %v739, 2147483648
    %v752 = vor.u32 1.1754944e-38, %v751
    %v753 = vsel %vm750, %v752, %v748
    %v754 = vmul.f32 1.0, %v753
    %v755 = vtanh.pop %v734
    %v756 = vmul.f32 %v754, %v554
    %758 = vrot.lane.b32.xlu0 %v755, 64
    %v759 = vpop.permute.xlu0 %758
    %v761 = vmul.f32 %v754, %v759
    %763 = vrot.lane.b32.xlu0 %v761, 32
    %v764 = vpop.permute.xlu0 %763
    %v766 = vadd.f32 %v756, %v764
    %v767 = vtanh.pop %v766
    %769 = vrot.lane.b32.xlu0 %v767, 64
    %v770 = vpop.permute.xlu0 %769
    %v772 = vmul.f32 %v754, %v770
    %774 = vrot.lane.b32.xlu0 %v772, 32
    %v775 = vpop.permute.xlu0 %774
    %v777 = vsel %vm75, %v775, %v766
    %v779 = vsel %vm136, %v777, 0
    %781 = vmatpush.msra.mxu0 0.0
    %782 = vmatpush.msra.mxu0 0.0
    %783 = vmatpush.msra.mxu0 0.0
    %784 = vmatpush.msra.mxu0 0.0
    %785 = vmatpush.msra.mxu0 0.0
    %786 = vmatpush.msra.mxu0 0.0
    %787 = vmatpush.msra.mxu0 0.0
    %788 = vmatpush.msra.mxu0 0.0
    %789 = vmatpush.msra.mxu0 %v112
    %790 = vmatpush.msra.mxu0 %v111
    %791 = vmatpush.msra.mxu0 %v110
    %792 = vmatpush.msra.mxu0 %v109
    %793 = vmatpush.msra.mxu0 %v108
    %794 = vmatpush.msra.mxu0 %v107
    %795 = vmatpush.msra.mxu0 %v106
    %796 = vmatpush.msra.mxu0 %v105
    %797 = vmatmul.f32.gmra.mxu0 %v779
    %v798 = vpop.f32.mrf.mxu0
    %v799 = vadd.f32 %v134, %v798
    %800 = vdwg.mxu0
    %v802 = vrot.slane %v799, 1
    %v803 = vperm.slane %v799, 0
    %v804 = vperm.slane %v802, 0
    %v807 = vadd.f32 %v100, %v803
    %v808 = vadd.f32 %v103, %v804
    %v809 = vtanh.pop %v807
    %v810 = vtanh.pop %v808
    %v811 = vmul.f32 %v809, %v171
    %v812 = vmul.f32 %v810, %v171
    %v813 = vsel %vm75, %v811, 0.0
    %814 = vadd.xlane.f32.xlu0 %v813
    %v815 = vpop.xlane.xlu0 %814
    %v816 = vsel %vm75, %v812, 0.0
    %817 = vadd.xlane.f32.xlu0 %v816
    %v818 = vpop.xlane.xlu0 %817
    %v819 = vadd.f32 %v815, %v181
    %v820 = vadd.f32 %v818, %v181
    %v823 = vperm.slane %v819, %v187
    %v824 = vperm.slane %v820, %v187
    %v825 = vsel %vm190, %v824, %v823
    %v827 = vsel %vm193, %v825, -inf
    %828 = vmax.xlane.f32.xlu0 %v827
    %v829 = vpop.xlane.xlu0 %828
    %v831 = vperm.slane %v829, 0
    %v832 = vperm.slane %v829, 1
    %v835 = vsub.f32 %v819, %v831
    %v836 = vsub.f32 %v820, %v832
    %v837 = vmul.f32 %v835, 1.442695
    %v838 = vpow.pop %v837
    %v839 = vmul.f32 %v836, 1.442695
    %v840 = vpow.pop %v839
    %843 = vset.pattern.permute.xlu0 0
    %844 = vperm.xlu0 %843, %v838
    %v845 = vpop.permute.xlu0 %844
    %846 = vset.pattern.permute.xlu0 0
    %847 = vperm.xlu0 %846, %v840
    %v848 = vpop.permute.xlu0 %847
    %v849 = vperm.slane %v845, %v187
    %v850 = vperm.slane %v848, %v187
    %v851 = vsel %vm190, %v850, %v849
    %v853 = vsel %vm193, %v851, 0.0
    %854 = vadd.xlane.f32.xlu0 %v853
    %v855 = vpop.xlane.xlu0 %854
    %v857 = vperm.slane %v855, 0
    %v858 = vperm.slane %v855, 1
    %v861 = vrcp.pop %v857
    %v862 = vmul.f32 %v857, %v861
    %v863 = vsub.f32 1.0, %v862
    %v864 = vmul.f32 %v861, %v863
    %v865 = vadd.f32 %v861, %v864
    %vm866 = vweird.f32 %v857
    %vm867 = vweird.f32 %v861
    %vm868 = vmor %vm866, %vm867
    %v869 = vsel %vm868, %v861, %v865
    %v870 = vand.u32 2147483647, %v857
    %vm871 = vcmp.eq.f32.partialorder %v870, 8.507059e+37
    %v872 = vand.u32 %v857, 2147483648
    %v873 = vor.u32 1.1754944e-38, %v872
    %v874 = vsel %vm871, %v873, %v869
    %v875 = vmul.f32 %v838, %v874
    %v876 = vrcp.pop %v858
    %v877 = vmul.f32 %v858, %v876
    %v878 = vsub.f32 1.0, %v877
    %v879 = vmul.f32 %v876, %v878
    %v880 = vadd.f32 %v876, %v879
    %vm881 = vweird.f32 %v858
    %vm882 = vweird.f32 %v876
    %vm883 = vmor %vm881, %vm882
    %v884 = vsel %vm883, %v876, %v880
    %v885 = vand.u32 2147483647, %v858
    %vm886 = vcmp.eq.f32.partialorder %v885, 8.507059e+37
    %v887 = vand.u32 %v858, 2147483648
    %v888 = vor.u32 1.1754944e-38, %v887
    %v889 = vsel %vm886, %v888, %v884
    %v890 = vmul.f32 %v840, %v889
    %892 = vset.pattern.permute.xlu0 0
    %893 = vperm.xlu0 %892, %v875
    %v894 = vpop.permute.xlu0 %893
    %897 = vset.pattern.permute.xlu0 0
    %898 = vperm.xlu0 %897, %v890
    %v899 = vpop.permute.xlu0 %898
    %v901 = vmul.f32 %v894, %v69
    %v902 = vmul.f32 %v899, %v70
    %v903 = vsel %vm75, %v901, 0.0
    %v904 = vrot.slane %v903, 4
    %v905 = vadd.f32 %v903, %v904
    %v906 = vrot.slane %v905, 2
    %v907 = vadd.f32 %v905, %v906
    %v908 = vrot.slane %v907, 1
    %v909 = vadd.f32 %v907, %v908
    %v910 = vsel %vm75, %v902, 0.0
    %v911 = vrot.slane %v910, 4
    %v912 = vadd.f32 %v910, %v911
    %v913 = vrot.slane %v912, 2
    %v914 = vadd.f32 %v912, %v913
    %v915 = vrot.slane %v914, 1
    %v916 = vadd.f32 %v914, %v915
    %v919 = vsel %vm190, %v916, %v909
    %921 = vrot.lane.b32.xlu0 %v772, 64
    %v922 = vpop.permute.xlu0 %921
    %v924 = vsel %vm75, %v919, %v922
    %v926 = vsel %vm136, %v924, 0
    %928 = vmatpush.msra.mxu0 0.0
    %929 = vmatpush.msra.mxu0 0.0
    %930 = vmatpush.msra.mxu0 0.0
    %931 = vmatpush.msra.mxu0 0.0
    %932 = vmatpush.msra.mxu0 0.0
    %933 = vmatpush.msra.mxu0 0.0
    %934 = vmatpush.msra.mxu0 0.0
    %935 = vmatpush.msra.mxu0 0.0
    %936 = vmatpush.msra.mxu0 %v122
    %937 = vmatpush.msra.mxu0 %v121
    %938 = vmatpush.msra.mxu0 %v120
    %939 = vmatpush.msra.mxu0 %v119
    %940 = vmatpush.msra.mxu0 %v118
    %941 = vmatpush.msra.mxu0 %v117
    %942 = vmatpush.msra.mxu0 %v116
    %943 = vmatpush.msra.mxu0 %v115
    %944 = vmatmul.f32.gmra.mxu0 %v926
    %v945 = vpop.f32.mrf.mxu0
    %v946 = vadd.f32 %v126, %v945
    %947 = vdwg.mxu0
    %v948 = vxor.u32 %v946, 2147483648
    %v949 = vmul.f32 %v948, 1.442695
    %v950 = vpow.pop %v949
    %v951 = vadd.f32 %v950, 1.0
    %v952 = vrcp.pop %v951
    %v953 = vmul.f32 %v951, %v952
    %v954 = vsub.f32 1.0, %v953
    %v955 = vmul.f32 %v952, %v954
    %v956 = vadd.f32 %v952, %v955
    %vm957 = vweird.f32 %v951
    %vm958 = vweird.f32 %v952
    %vm959 = vmor %vm957, %vm958
    %v960 = vsel %vm959, %v952, %v956
    %v961 = vand.u32 2147483647, %v951
    %vm962 = vcmp.eq.f32.partialorder %v961, 8.507059e+37
    %v963 = vand.u32 %v951, 2147483648
    %v964 = vor.u32 1.1754944e-38, %v963
    %v965 = vsel %vm962, %v964, %v960
    %v966 = vmul.f32 1.0, %v965
    %v967 = vtanh.pop %v946
    %v968 = vmul.f32 %v966, %v766
    %970 = vrot.lane.b32.xlu0 %v967, 64
    %v971 = vpop.permute.xlu0 %970
    %v973 = vmul.f32 %v966, %v971
    %975 = vrot.lane.b32.xlu0 %v973, 32
    %v976 = vpop.permute.xlu0 %975
    %v978 = vadd.f32 %v968, %v976
    %v979 = vtanh.pop %v978
    %981 = vrot.lane.b32.xlu0 %v979, 64
    %v982 = vpop.permute.xlu0 %981
    %v984 = vmul.f32 %v966, %v982
    %986 = vrot.lane.b32.xlu0 %v984, 32
    %v987 = vpop.permute.xlu0 %986
    %v989 = vsel %vm75, %v987, %v978
    %v991 = vsel %vm136, %v989, 0
    %993 = vmatpush.msra.mxu0 0.0
    %994 = vmatpush.msra.mxu0 0.0
    %995 = vmatpush.msra.mxu0 0.0
    %996 = vmatpush.msra.mxu0 0.0
    %997 = vmatpush.msra.mxu0 0.0
    %998 = vmatpush.msra.mxu0 0.0
    %999 = vmatpush.msra.mxu0 0.0
    %1000 = vmatpush.msra.mxu0 0.0
    %1001 = vmatpush.msra.mxu0 %v112
    %1002 = vmatpush.msra.mxu0 %v111
    %1003 = vmatpush.msra.mxu0 %v110
    %1004 = vmatpush.msra.mxu0 %v109
    %1005 = vmatpush.msra.mxu0 %v108
    %1006 = vmatpush.msra.mxu0 %v107
    %1007 = vmatpush.msra.mxu0 %v106
    %1008 = vmatpush.msra.mxu0 %v105
    %1009 = vmatmul.f32.gmra.mxu0 %v991
    %v1010 = vpop.f32.mrf.mxu0
    %v1011 = vadd.f32 %v134, %v1010
    %1012 = vdwg.mxu0
    %v1014 = vrot.slane %v1011, 1
    %v1015 = vperm.slane %v1011, 0
    %v1016 = vperm.slane %v1014, 0
    %v1019 = vadd.f32 %v100, %v1015
    %v1020 = vadd.f32 %v103, %v1016
    %v1021 = vtanh.pop %v1019
    %v1022 = vtanh.pop %v1020
    %v1023 = vmul.f32 %v1021, %v171
    %v1024 = vmul.f32 %v1022, %v171
    %v1025 = vsel %vm75, %v1023, 0.0
    %1026 = vadd.xlane.f32.xlu0 %v1025
    %v1027 = vpop.xlane.xlu0 %1026
    %v1028 = vsel %vm75, %v1024, 0.0
    %1029 = vadd.xlane.f32.xlu0 %v1028
    %v1030 = vpop.xlane.xlu0 %1029
    %v1031 = vadd.f32 %v1027, %v181
    %v1032 = vadd.f32 %v1030, %v181
    %v1035 = vperm.slane %v1031, %v187
    %v1036 = vperm.slane %v1032, %v187
    %v1037 = vsel %vm190, %v1036, %v1035
    %v1039 = vsel %vm193, %v1037, -inf
    %1040 = vmax.xlane.f32.xlu0 %v1039
    %v1041 = vpop.xlane.xlu0 %1040
    %v1043 = vperm.slane %v1041, 0
    %v1044 = vperm.slane %v1041, 1
    %v1047 = vsub.f32 %v1031, %v1043
    %v1048 = vsub.f32 %v1032, %v1044
    %v1049 = vmul.f32 %v1047, 1.442695
    %v1050 = vpow.pop %v1049
    %v1051 = vmul.f32 %v1048, 1.442695
    %v1052 = vpow.pop %v1051
    %1055 = vset.pattern.permute.xlu0 0
    %1056 = vperm.xlu0 %1055, %v1050
    %v1057 = vpop.permute.xlu0 %1056
    %1058 = vset.pattern.permute.xlu0 0
    %1059 = vperm.xlu0 %1058, %v1052
    %v1060 = vpop.permute.xlu0 %1059
    %v1061 = vperm.slane %v1057, %v187
    %v1062 = vperm.slane %v1060, %v187
    %v1063 = vsel %vm190, %v1062, %v1061
    %v1065 = vsel %vm193, %v1063, 0.0
    %1066 = vadd.xlane.f32.xlu0 %v1065
    %v1067 = vpop.xlane.xlu0 %1066
    %v1069 = vperm.slane %v1067, 0
    %v1070 = vperm.slane %v1067, 1
    %v1073 = vrcp.pop %v1069
    %v1074 = vmul.f32 %v1069, %v1073
    %v1075 = vsub.f32 1.0, %v1074
    %v1076 = vmul.f32 %v1073, %v1075
    %v1077 = vadd.f32 %v1073, %v1076
    %vm1078 = vweird.f32 %v1069
    %vm1079 = vweird.f32 %v1073
    %vm1080 = vmor %vm1078, %vm1079
    %v1081 = vsel %vm1080, %v1073, %v1077
    %v1082 = vand.u32 2147483647, %v1069
    %vm1083 = vcmp.eq.f32.partialorder %v1082, 8.507059e+37
    %v1084 = vand.u32 %v1069, 2147483648
    %v1085 = vor.u32 1.1754944e-38, %v1084
    %v1086 = vsel %vm1083, %v1085, %v1081
    %v1087 = vmul.f32 %v1050, %v1086
    %v1088 = vrcp.pop %v1070
    %v1089 = vmul.f32 %v1070, %v1088
    %v1090 = vsub.f32 1.0, %v1089
    %v1091 = vmul.f32 %v1088, %v1090
    %v1092 = vadd.f32 %v1088, %v1091
    %vm1093 = vweird.f32 %v1070
    %vm1094 = vweird.f32 %v1088
    %vm1095 = vmor %vm1093, %vm1094
    %v1096 = vsel %vm1095, %v1088, %v1092
    %v1097 = vand.u32 2147483647, %v1070
    %vm1098 = vcmp.eq.f32.partialorder %v1097, 8.507059e+37
    %v1099 = vand.u32 %v1070, 2147483648
    %v1100 = vor.u32 1.1754944e-38, %v1099
    %v1101 = vsel %vm1098, %v1100, %v1096
    %v1102 = vmul.f32 %v1052, %v1101
    %1104 = vset.pattern.permute.xlu0 0
    %1105 = vperm.xlu0 %1104, %v1087
    %v1106 = vpop.permute.xlu0 %1105
    %1109 = vset.pattern.permute.xlu0 0
    %1110 = vperm.xlu0 %1109, %v1102
    %v1111 = vpop.permute.xlu0 %1110
    %v1113 = vmul.f32 %v1106, %v69
    %v1114 = vmul.f32 %v1111, %v70
    %v1115 = vsel %vm75, %v1113, 0.0
    %v1116 = vrot.slane %v1115, 4
    %v1117 = vadd.f32 %v1115, %v1116
    %v1118 = vrot.slane %v1117, 2
    %v1119 = vadd.f32 %v1117, %v1118
    %v1120 = vrot.slane %v1119, 1
    %v1121 = vadd.f32 %v1119, %v1120
    %v1122 = vsel %vm75, %v1114, 0.0
    %v1123 = vrot.slane %v1122, 4
    %v1124 = vadd.f32 %v1122, %v1123
    %v1125 = vrot.slane %v1124, 2
    %v1126 = vadd.f32 %v1124, %v1125
    %v1127 = vrot.slane %v1126, 1
    %v1128 = vadd.f32 %v1126, %v1127
    %v1131 = vsel %vm190, %v1128, %v1121
    %1133 = vrot.lane.b32.xlu0 %v984, 64
    %v1134 = vpop.permute.xlu0 %1133
    %v1136 = vsel %vm75, %v1131, %v1134
    %v1138 = vsel %vm136, %v1136, 0
    %1140 = vmatpush.msra.mxu0 0.0
    %1141 = vmatpush.msra.mxu0 0.0
    %1142 = vmatpush.msra.mxu0 0.0
    %1143 = vmatpush.msra.mxu0 0.0
    %1144 = vmatpush.msra.mxu0 0.0
    %1145 = vmatpush.msra.mxu0 0.0
    %1146 = vmatpush.msra.mxu0 0.0
    %1147 = vmatpush.msra.mxu0 0.0
    %1148 = vmatpush.msra.mxu0 %v122
    %1149 = vmatpush.msra.mxu0 %v121
    %1150 = vmatpush.msra.mxu0 %v120
    %1151 = vmatpush.msra.mxu0 %v119
    %1152 = vmatpush.msra.mxu0 %v118
    %1153 = vmatpush.msra.mxu0 %v117
    %1154 = vmatpush.msra.mxu0 %v116
    %1155 = vmatpush.msra.mxu0 %v115
    %1156 = vmatmul.f32.gmra.mxu0 %v1138
    %v1157 = vpop.f32.mrf.mxu0
    %v1158 = vadd.f32 %v127, %v1157
    %1159 = vdwg.mxu0
    %v1160 = vxor.u32 %v1158, 2147483648
    %v1161 = vmul.f32 %v1160, 1.442695
    %v1162 = vpow.pop %v1161
    %v1163 = vadd.f32 %v1162, 1.0
    %v1164 = vrcp.pop %v1163
    %v1165 = vmul.f32 %v1163, %v1164
    %v1166 = vsub.f32 1.0, %v1165
    %v1167 = vmul.f32 %v1164, %v1166
    %v1168 = vadd.f32 %v1164, %v1167
    %vm1169 = vweird.f32 %v1163
    %vm1170 = vweird.f32 %v1164
    %vm1171 = vmor %vm1169, %vm1170
    %v1172 = vsel %vm1171, %v1164, %v1168
    %v1173 = vand.u32 2147483647, %v1163
    %vm1174 = vcmp.eq.f32.partialorder %v1173, 8.507059e+37
    %v1175 = vand.u32 %v1163, 2147483648
    %v1176 = vor.u32 1.1754944e-38, %v1175
    %v1177 = vsel %vm1174, %v1176, %v1172
    %v1178 = vmul.f32 1.0, %v1177
    %v1179 = vtanh.pop %v1158
    %v1180 = vmul.f32 %v1178, %v978
    %1182 = vrot.lane.b32.xlu0 %v1179, 64
    %v1183 = vpop.permute.xlu0 %1182
    %v1185 = vmul.f32 %v1178, %v1183
    %1187 = vrot.lane.b32.xlu0 %v1185, 32
    %v1188 = vpop.permute.xlu0 %1187
    %v1190 = vadd.f32 %v1180, %v1188
    %v1191 = vtanh.pop %v1190
    %1193 = vrot.lane.b32.xlu0 %v1191, 64
    %v1194 = vpop.permute.xlu0 %1193
    %v1196 = vmul.f32 %v1178, %v1194
    %1198 = vrot.lane.b32.xlu0 %v1196, 32
    %v1199 = vpop.permute.xlu0 %1198
    %v1201 = vsel %vm75, %v1199, %v1190
    %v1203 = vsel %vm136, %v1201, 0
    %1205 = vmatpush.msra.mxu0 0.0
    %1206 = vmatpush.msra.mxu0 0.0
    %1207 = vmatpush.msra.mxu0 0.0
    %1208 = vmatpush.msra.mxu0 0.0
    %1209 = vmatpush.msra.mxu0 0.0
    %1210 = vmatpush.msra.mxu0 0.0
    %1211 = vmatpush.msra.mxu0 0.0
    %1212 = vmatpush.msra.mxu0 0.0
    %1213 = vmatpush.msra.mxu0 %v112
    %1214 = vmatpush.msra.mxu0 %v111
    %1215 = vmatpush.msra.mxu0 %v110
    %1216 = vmatpush.msra.mxu0 %v109
    %1217 = vmatpush.msra.mxu0 %v108
    %1218 = vmatpush.msra.mxu0 %v107
    %1219 = vmatpush.msra.mxu0 %v106
    %1220 = vmatpush.msra.mxu0 %v105
    %1221 = vmatmul.f32.gmra.mxu0 %v1203
    %v1222 = vpop.f32.mrf.mxu0
    %v1223 = vadd.f32 %v134, %v1222
    %1224 = vdwg.mxu0
    %v1226 = vrot.slane %v1223, 1
    %v1227 = vperm.slane %v1223, 0
    %v1228 = vperm.slane %v1226, 0
    %v1231 = vadd.f32 %v100, %v1227
    %v1232 = vadd.f32 %v103, %v1228
    %v1233 = vtanh.pop %v1231
    %v1234 = vtanh.pop %v1232
    %v1235 = vmul.f32 %v1233, %v171
    %v1236 = vmul.f32 %v1234, %v171
    %v1237 = vsel %vm75, %v1235, 0.0
    %1238 = vadd.xlane.f32.xlu0 %v1237
    %v1239 = vpop.xlane.xlu0 %1238
    %v1240 = vsel %vm75, %v1236, 0.0
    %1241 = vadd.xlane.f32.xlu0 %v1240
    %v1242 = vpop.xlane.xlu0 %1241
    %v1243 = vadd.f32 %v1239, %v181
    %v1244 = vadd.f32 %v1242, %v181
    %v1247 = vperm.slane %v1243, %v187
    %v1248 = vperm.slane %v1244, %v187
    %v1249 = vsel %vm190, %v1248, %v1247
    %v1251 = vsel %vm193, %v1249, -inf
    %1252 = vmax.xlane.f32.xlu0 %v1251
    %v1253 = vpop.xlane.xlu0 %1252
    %v1255 = vperm.slane %v1253, 0
    %v1256 = vperm.slane %v1253, 1
    %v1259 = vsub.f32 %v1243, %v1255
    %v1260 = vsub.f32 %v1244, %v1256
    %v1261 = vmul.f32 %v1259, 1.442695
    %v1262 = vpow.pop %v1261
    %v1263 = vmul.f32 %v1260, 1.442695
    %v1264 = vpow.pop %v1263
    %1267 = vset.pattern.permute.xlu0 0
    %1268 = vperm.xlu0 %1267, %v1262
    %v1269 = vpop.permute.xlu0 %1268
    %1270 = vset.pattern.permute.xlu0 0
    %1271 = vperm.xlu0 %1270, %v1264
    %v1272 = vpop.permute.xlu0 %1271
    %v1273 = vperm.slane %v1269, %v187
    %v1274 = vperm.slane %v1272, %v187
    %v1275 = vsel %vm190, %v1274, %v1273
    %v1277 = vsel %vm193, %v1275, 0.0
    %1278 = vadd.xlane.f32.xlu0 %v1277
    %v1279 = vpop.xlane.xlu0 %1278
    %v1281 = vperm.slane %v1279, 0
    %v1282 = vperm.slane %v1279, 1
    %v1285 = vrcp.pop %v1281
    %v1286 = vmul.f32 %v1281, %v1285
    %v1287 = vsub.f32 1.0, %v1286
    %v1288 = vmul.f32 %v1285, %v1287
    %v1289 = vadd.f32 %v1285, %v1288
    %vm1290 = vweird.f32 %v1281
    %vm1291 = vweird.f32 %v1285
    %vm1292 = vmor %vm1290, %vm1291
    %v1293 = vsel %vm1292, %v1285, %v1289
    %v1294 = vand.u32 2147483647, %v1281
    %vm1295 = vcmp.eq.f32.partialorder %v1294, 8.507059e+37
    %v1296 = vand.u32 %v1281, 2147483648
    %v1297 = vor.u32 1.1754944e-38, %v1296
    %v1298 = vsel %vm1295, %v1297, %v1293
    %v1299 = vmul.f32 %v1262, %v1298
    %v1300 = vrcp.pop %v1282
    %v1301 = vmul.f32 %v1282, %v1300
    %v1302 = vsub.f32 1.0, %v1301
    %v1303 = vmul.f32 %v1300, %v1302
    %v1304 = vadd.f32 %v1300, %v1303
    %vm1305 = vweird.f32 %v1282
    %vm1306 = vweird.f32 %v1300
    %vm1307 = vmor %vm1305, %vm1306
    %v1308 = vsel %vm1307, %v1300, %v1304
    %v1309 = vand.u32 2147483647, %v1282
    %vm1310 = vcmp.eq.f32.partialorder %v1309, 8.507059e+37
    %v1311 = vand.u32 %v1282, 2147483648
    %v1312 = vor.u32 1.1754944e-38, %v1311
    %v1313 = vsel %vm1310, %v1312, %v1308
    %v1314 = vmul.f32 %v1264, %v1313
    %1316 = vset.pattern.permute.xlu0 0
    %1317 = vperm.xlu0 %1316, %v1299
    %v1318 = vpop.permute.xlu0 %1317
    %1321 = vset.pattern.permute.xlu0 0
    %1322 = vperm.xlu0 %1321, %v1314
    %v1323 = vpop.permute.xlu0 %1322
    %v1325 = vmul.f32 %v1318, %v69
    %v1326 = vmul.f32 %v1323, %v70
    %v1327 = vsel %vm75, %v1325, 0.0
    %v1328 = vrot.slane %v1327, 4
    %v1329 = vadd.f32 %v1327, %v1328
    %v1330 = vrot.slane %v1329, 2
    %v1331 = vadd.f32 %v1329, %v1330
    %v1332 = vrot.slane %v1331, 1
    %v1333 = vadd.f32 %v1331, %v1332
    %v1334 = vsel %vm75, %v1326, 0.0
    %v1335 = vrot.slane %v1334, 4
    %v1336 = vadd.f32 %v1334, %v1335
    %v1337 = vrot.slane %v1336, 2
    %v1338 = vadd.f32 %v1336, %v1337
    %v1339 = vrot.slane %v1338, 1
    %v1340 = vadd.f32 %v1338, %v1339
    %v1343 = vsel %vm190, %v1340, %v1333
    %1345 = vrot.lane.b32.xlu0 %v1196, 64
    %v1346 = vpop.permute.xlu0 %1345
    %v1348 = vsel %vm75, %v1343, %v1346
    %v1350 = vsel %vm136, %v1348, 0
    %1352 = vmatpush.msra.mxu0 0.0
    %1353 = vmatpush.msra.mxu0 0.0
    %1354 = vmatpush.msra.mxu0 0.0
    %1355 = vmatpush.msra.mxu0 0.0
    %1356 = vmatpush.msra.mxu0 0.0
    %1357 = vmatpush.msra.mxu0 0.0
    %1358 = vmatpush.msra.mxu0 0.0
    %1359 = vmatpush.msra.mxu0 0.0
    %1360 = vmatpush.msra.mxu0 %v122
    %1361 = vmatpush.msra.mxu0 %v121
    %1362 = vmatpush.msra.mxu0 %v120
    %1363 = vmatpush.msra.mxu0 %v119
    %1364 = vmatpush.msra.mxu0 %v118
    %1365 = vmatpush.msra.mxu0 %v117
    %1366 = vmatpush.msra.mxu0 %v116
    %1367 = vmatpush.msra.mxu0 %v115
    %1368 = vmatmul.f32.gmra.mxu0 %v1350
    %v1369 = vpop.f32.mrf.mxu0
    %v1370 = vadd.f32 %v128, %v1369
    %1371 = vdwg.mxu0
    %v1372 = vxor.u32 %v1370, 2147483648
    %v1373 = vmul.f32 %v1372, 1.442695
    %v1374 = vpow.pop %v1373
    %v1375 = vadd.f32 %v1374, 1.0
    %v1376 = vrcp.pop %v1375
    %v1377 = vmul.f32 %v1375, %v1376
    %v1378 = vsub.f32 1.0, %v1377
    %v1379 = vmul.f32 %v1376, %v1378
    %v1380 = vadd.f32 %v1376, %v1379
    %vm1381 = vweird.f32 %v1375
    %vm1382 = vweird.f32 %v1376
    %vm1383 = vmor %vm1381, %vm1382
    %v1384 = vsel %vm1383, %v1376, %v1380
    %v1385 = vand.u32 2147483647, %v1375
    %vm1386 = vcmp.eq.f32.partialorder %v1385, 8.507059e+37
    %v1387 = vand.u32 %v1375, 2147483648
    %v1388 = vor.u32 1.1754944e-38, %v1387
    %v1389 = vsel %vm1386, %v1388, %v1384
    %v1390 = vmul.f32 1.0, %v1389
    %v1391 = vtanh.pop %v1370
    %v1392 = vmul.f32 %v1390, %v1190
    %1394 = vrot.lane.b32.xlu0 %v1391, 64
    %v1395 = vpop.permute.xlu0 %1394
    %v1397 = vmul.f32 %v1390, %v1395
    %1399 = vrot.lane.b32.xlu0 %v1397, 32
    %v1400 = vpop.permute.xlu0 %1399
    %v1402 = vadd.f32 %v1392, %v1400
    %v1403 = vtanh.pop %v1402
    %1405 = vrot.lane.b32.xlu0 %v1403, 64
    %v1406 = vpop.permute.xlu0 %1405
    %v1408 = vmul.f32 %v1390, %v1406
    %1410 = vrot.lane.b32.xlu0 %v1408, 32
    %v1411 = vpop.permute.xlu0 %1410
    %v1413 = vsel %vm75, %v1411, %v1402
    %v1415 = vsel %vm136, %v1413, 0
    %1417 = vmatpush.msra.mxu0 0.0
    %1418 = vmatpush.msra.mxu0 0.0
    %1419 = vmatpush.msra.mxu0 0.0
    %1420 = vmatpush.msra.mxu0 0.0
    %1421 = vmatpush.msra.mxu0 0.0
    %1422 = vmatpush.msra.mxu0 0.0
    %1423 = vmatpush.msra.mxu0 0.0
    %1424 = vmatpush.msra.mxu0 0.0
    %1425 = vmatpush.msra.mxu0 %v112
    %1426 = vmatpush.msra.mxu0 %v111
    %1427 = vmatpush.msra.mxu0 %v110
    %1428 = vmatpush.msra.mxu0 %v109
    %1429 = vmatpush.msra.mxu0 %v108
    %1430 = vmatpush.msra.mxu0 %v107
    %1431 = vmatpush.msra.mxu0 %v106
    %1432 = vmatpush.msra.mxu0 %v105
    %1433 = vmatmul.f32.gmra.mxu0 %v1415
    %v1434 = vpop.f32.mrf.mxu0
    %v1435 = vadd.f32 %v134, %v1434
    %1436 = vdwg.mxu0
    %v1438 = vrot.slane %v1435, 1
    %v1439 = vperm.slane %v1435, 0
    %v1440 = vperm.slane %v1438, 0
    %v1443 = vadd.f32 %v100, %v1439
    %v1444 = vadd.f32 %v103, %v1440
    %v1445 = vtanh.pop %v1443
    %v1446 = vtanh.pop %v1444
    %v1447 = vmul.f32 %v1445, %v171
    %v1448 = vmul.f32 %v1446, %v171
    %v1449 = vsel %vm75, %v1447, 0.0
    %1450 = vadd.xlane.f32.xlu0 %v1449
    %v1451 = vpop.xlane.xlu0 %1450
    %v1452 = vsel %vm75, %v1448, 0.0
    %1453 = vadd.xlane.f32.xlu0 %v1452
    %v1454 = vpop.xlane.xlu0 %1453
    %v1455 = vadd.f32 %v1451, %v181
    %v1456 = vadd.f32 %v1454, %v181
    %v1459 = vperm.slane %v1455, %v187
    %v1460 = vperm.slane %v1456, %v187
    %v1461 = vsel %vm190, %v1460, %v1459
    %v1463 = vsel %vm193, %v1461, -inf
    %1464 = vmax.xlane.f32.xlu0 %v1463
    %v1465 = vpop.xlane.xlu0 %1464
    %v1467 = vperm.slane %v1465, 0
    %v1468 = vperm.slane %v1465, 1
    %v1471 = vsub.f32 %v1455, %v1467
    %v1472 = vsub.f32 %v1456, %v1468
    %v1473 = vmul.f32 %v1471, 1.442695
    %v1474 = vpow.pop %v1473
    %v1475 = vmul.f32 %v1472, 1.442695
    %v1476 = vpow.pop %v1475
    %1479 = vset.pattern.permute.xlu0 0
    %1480 = vperm.xlu0 %1479, %v1474
    %v1481 = vpop.permute.xlu0 %1480
    %1482 = vset.pattern.permute.xlu0 0
    %1483 = vperm.xlu0 %1482, %v1476
    %v1484 = vpop.permute.xlu0 %1483
    %v1485 = vperm.slane %v1481, %v187
    %v1486 = vperm.slane %v1484, %v187
    %v1487 = vsel %vm190, %v1486, %v1485
    %v1489 = vsel %vm193, %v1487, 0.0
    %1490 = vadd.xlane.f32.xlu0 %v1489
    %v1491 = vpop.xlane.xlu0 %1490
    %v1493 = vperm.slane %v1491, 0
    %v1494 = vperm.slane %v1491, 1
    %v1497 = vrcp.pop %v1493
    %v1498 = vmul.f32 %v1493, %v1497
    %v1499 = vsub.f32 1.0, %v1498
    %v1500 = vmul.f32 %v1497, %v1499
    %v1501 = vadd.f32 %v1497, %v1500
    %vm1502 = vweird.f32 %v1493
    %vm1503 = vweird.f32 %v1497
    %vm1504 = vmor %vm1502, %vm1503
    %v1505 = vsel %vm1504, %v1497, %v1501
    %v1506 = vand.u32 2147483647, %v1493
    %vm1507 = vcmp.eq.f32.partialorder %v1506, 8.507059e+37
    %v1508 = vand.u32 %v1493, 2147483648
    %v1509 = vor.u32 1.1754944e-38, %v1508
    %v1510 = vsel %vm1507, %v1509, %v1505
    %v1511 = vmul.f32 %v1474, %v1510
    %v1512 = vrcp.pop %v1494
    %v1513 = vmul.f32 %v1494, %v1512
    %v1514 = vsub.f32 1.0, %v1513
    %v1515 = vmul.f32 %v1512, %v1514
    %v1516 = vadd.f32 %v1512, %v1515
    %vm1517 = vweird.f32 %v1494
    %vm1518 = vweird.f32 %v1512
    %vm1519 = vmor %vm1517, %vm1518
    %v1520 = vsel %vm1519, %v1512, %v1516
    %v1521 = vand.u32 2147483647, %v1494
    %vm1522 = vcmp.eq.f32.partialorder %v1521, 8.507059e+37
    %v1523 = vand.u32 %v1494, 2147483648
    %v1524 = vor.u32 1.1754944e-38, %v1523
    %v1525 = vsel %vm1522, %v1524, %v1520
    %v1526 = vmul.f32 %v1476, %v1525
    %1528 = vset.pattern.permute.xlu0 0
    %1529 = vperm.xlu0 %1528, %v1511
    %v1530 = vpop.permute.xlu0 %1529
    %1533 = vset.pattern.permute.xlu0 0
    %1534 = vperm.xlu0 %1533, %v1526
    %v1535 = vpop.permute.xlu0 %1534
    %v1537 = vmul.f32 %v1530, %v69
    %v1538 = vmul.f32 %v1535, %v70
    %v1539 = vsel %vm75, %v1537, 0.0
    %v1540 = vrot.slane %v1539, 4
    %v1541 = vadd.f32 %v1539, %v1540
    %v1542 = vrot.slane %v1541, 2
    %v1543 = vadd.f32 %v1541, %v1542
    %v1544 = vrot.slane %v1543, 1
    %v1545 = vadd.f32 %v1543, %v1544
    %v1546 = vsel %vm75, %v1538, 0.0
    %v1547 = vrot.slane %v1546, 4
    %v1548 = vadd.f32 %v1546, %v1547
    %v1549 = vrot.slane %v1548, 2
    %v1550 = vadd.f32 %v1548, %v1549
    %v1551 = vrot.slane %v1550, 1
    %v1552 = vadd.f32 %v1550, %v1551
    %v1555 = vsel %vm190, %v1552, %v1545
    %1557 = vrot.lane.b32.xlu0 %v1408, 64
    %v1558 = vpop.permute.xlu0 %1557
    %v1560 = vsel %vm75, %v1555, %v1558
    %v1562 = vsel %vm136, %v1560, 0
    %1564 = vmatpush.msra.mxu0 0.0
    %1565 = vmatpush.msra.mxu0 0.0
    %1566 = vmatpush.msra.mxu0 0.0
    %1567 = vmatpush.msra.mxu0 0.0
    %1568 = vmatpush.msra.mxu0 0.0
    %1569 = vmatpush.msra.mxu0 0.0
    %1570 = vmatpush.msra.mxu0 0.0
    %1571 = vmatpush.msra.mxu0 0.0
    %1572 = vmatpush.msra.mxu0 %v122
    %1573 = vmatpush.msra.mxu0 %v121
    %1574 = vmatpush.msra.mxu0 %v120
    %1575 = vmatpush.msra.mxu0 %v119
    %1576 = vmatpush.msra.mxu0 %v118
    %1577 = vmatpush.msra.mxu0 %v117
    %1578 = vmatpush.msra.mxu0 %v116
    %1579 = vmatpush.msra.mxu0 %v115
    %1580 = vmatmul.f32.gmra.mxu0 %v1562
    %v1581 = vpop.f32.mrf.mxu0
    %v1582 = vadd.f32 %v129, %v1581
    %1583 = vdwg.mxu0
    %v1584 = vxor.u32 %v1582, 2147483648
    %v1585 = vmul.f32 %v1584, 1.442695
    %v1586 = vpow.pop %v1585
    %v1587 = vadd.f32 %v1586, 1.0
    %v1588 = vrcp.pop %v1587
    %v1589 = vmul.f32 %v1587, %v1588
    %v1590 = vsub.f32 1.0, %v1589
    %v1591 = vmul.f32 %v1588, %v1590
    %v1592 = vadd.f32 %v1588, %v1591
    %vm1593 = vweird.f32 %v1587
    %vm1594 = vweird.f32 %v1588
    %vm1595 = vmor %vm1593, %vm1594
    %v1596 = vsel %vm1595, %v1588, %v1592
    %v1597 = vand.u32 2147483647, %v1587
    %vm1598 = vcmp.eq.f32.partialorder %v1597, 8.507059e+37
    %v1599 = vand.u32 %v1587, 2147483648
    %v1600 = vor.u32 1.1754944e-38, %v1599
    %v1601 = vsel %vm1598, %v1600, %v1596
    %v1602 = vmul.f32 1.0, %v1601
    %v1603 = vtanh.pop %v1582
    %v1604 = vmul.f32 %v1602, %v1402
    %1606 = vrot.lane.b32.xlu0 %v1603, 64
    %v1607 = vpop.permute.xlu0 %1606
    %v1609 = vmul.f32 %v1602, %v1607
    %1611 = vrot.lane.b32.xlu0 %v1609, 32
    %v1612 = vpop.permute.xlu0 %1611
    %v1614 = vadd.f32 %v1604, %v1612
    %v1615 = vtanh.pop %v1614
    %1617 = vrot.lane.b32.xlu0 %v1615, 64
    %v1618 = vpop.permute.xlu0 %1617
    %v1620 = vmul.f32 %v1602, %v1618
    %v1622 = vperm.slane %v130, 0
    %1623 = vrot.lane.b32.xlu0 %v1622, 96
    %v1624 = vpop.permute.xlu0 %1623
    %v1626 = vmul.f32 %v1620, %v1624
    %1628 = vrot.lane.b32.xlu0 %v1626, 32
    %v1629 = vpop.permute.xlu0 %1628
    %vm1631 = vcmask 254976
    %v1632 = vsel %vm1631, %v1629, 0.0
    %1633 = vadd.xlane.f32.xlu0 %v1632
    %v1634 = vpop.xlane.xlu0 %1633
    %v1635 = vmul.f32 %v1545, %v1624
    %v1636 = vmul.f32 %v1552, %v1624
    %v1639 = vrot.slane %v1636, 7
    %v1640 = vsel %vm190, %v1639, %v1635
    %v1642 = vsel %vm1631, %v1640, 0.0
    %1643 = vadd.xlane.f32.xlu0 %v1642
    %v1644 = vpop.xlane.xlu0 %1643
    %v1645 = vadd.f32 %v1634, %v1644
    %v1646 = vstv %s132
    %v1647 = vadd.f32 %v1645, %v1646
    %vm1648 = vcmask 1024
    %1649 = vst.msk [vmem:[%s10] sm:$0x3] %vm1648, %v1647
    // Predicated region
    $region50: #{tpu_custom_call.1} parent=1 // pred_check
      _
    $region51: #{tpu_custom_call.1} parent=1 // pred_check_branch
      %1651 = sbr.rel (0) target = $region53
    $region52: #{tpu_custom_call.1} parent=1 // pred_region
      _
    $region53: #{tpu_custom_call.1} parent=1 // pred_fallthru
      _
    // Predicated region
    $region54: #{tpu_custom_call.1} parent=1 // pred_check
      _
    $region55: #{tpu_custom_call.1} parent=1 // pred_check_branch
      %1653 = sbr.rel (0) target = $region57
    $region56: #{tpu_custom_call.1} parent=1 // pred_region
      _
    $region57: #{tpu_custom_call.1} parent=1 // pred_fallthru
      _
    %1654 = vsyncpa [#allocation5], 1
    %1655 = vsyncpa [#allocation7], 1

</llo_original>
